<compile_context>
chip_gen: v6e
topology: v6e:2x2x1
jax: 0.10.0
libtpu: 0.0.40
codegen_flags: <defaults>
</compile_context>

<pallas_src>
import numpy as np
import jax
import jax.numpy as jnp
from jax.experimental import pallas as pl
from jax.experimental.pallas import tpu as pltpu


# ----------------------- rotary matrix (reference / host-side only) ------------
def get_rotary_matrix(context_window, embedding_dim):
    R = np.zeros((context_window, embedding_dim, embedding_dim), dtype=np.float32)
    for position in range(context_window):
        for i in range(embedding_dim // 2):
            theta = 10000.0 ** (-2.0 * (i - 1) / embedding_dim)
            m_theta = position * theta
            R[position, 2 * i, 2 * i] = np.cos(m_theta)
            R[position, 2 * i, 2 * i + 1] = -np.sin(m_theta)
            R[position, 2 * i + 1, 2 * i] = np.sin(m_theta)
            R[position, 2 * i + 1, 2 * i + 1] = np.cos(m_theta)
    return jnp.asarray(R)


# ----------------------- host-side weight / table preparation ------------------
def prepare_fused(params, m):
    """Pre-concatenate per-head weights and build RoPE cos/sin tables."""
    H, d, _ = params["wq_t"].shape
    Hd = H * d
    # stack per-head W^T so that x @ W_all gives all heads concatenated on lanes
    wq_all = jnp.transpose(params["wq_t"], (1, 0, 2)).reshape(d, Hd)
    wk_all = jnp.transpose(params["wk_t"], (1, 0, 2)).reshape(d, Hd)
    wv_all = jnp.transpose(params["wv_t"], (1, 0, 2)).reshape(d, Hd)
    # pair-swap-with-sign matrix J: (x @ J)[2i] = x[2i+1], (x @ J)[2i+1] = -x[2i]
    J = np.zeros((Hd, Hd), np.float32)
    for i in range(Hd // 2):
        J[2 * i + 1, 2 * i] = 1.0
        J[2 * i, 2 * i + 1] = -1.0
    J = jnp.asarray(J)
    wq2 = wq_all @ J
    wk2 = wk_all @ J
    # one wide projection: [ q | k | q_swapped | k_swapped | v ]  -> (d, 5*Hd)
    wbig = jnp.concatenate([wq_all, wk_all, wq2, wk2, wv_all], axis=1)

    # cos/sin tables with the reference's quirky theta = 10000**(-2*(i-1)/d)
    pos = np.arange(m, dtype=np.float32)[:, None]
    idx = np.arange(d // 2, dtype=np.float32)[None, :]
    theta = 10000.0 ** (-2.0 * (idx - 1.0) / d)
    ang = pos * theta                                     # (m, d//2)
    cos = np.repeat(np.cos(ang).astype(np.float32), 2, axis=1)   # (m, d)
    sin = np.repeat(np.sin(ang).astype(np.float32), 2, axis=1)   # (m, d)
    cos2 = jnp.asarray(np.tile(cos, (1, 2 * H)))          # (m, 2*Hd) covers [q|k]
    sin2 = jnp.asarray(np.tile(sin, (1, 2 * H)))

    return dict(scale=params["scale"][:m, :], cos2=cos2, sin2=sin2, wbig=wbig,
                wo=params["wo_t"], bo=params["bo"], w1=params["w1_t"],
                b1=params["b1"], wl=params["wl_t"], bl=params["bl"])


# ----------------------------- fused forward kernel ----------------------------
def _fused_forward_kernel(x_ref, scale_ref, cos_ref, sin_ref, wbig_ref, wo_ref,
                          bo_ref, w1_ref, b1_ref, wl_ref, bl_ref, o_ref):
    x = x_ref[0]                                   # (m, d) post-embedding
    m, d = x.shape
    Hd = wo_ref.shape[0]                           # n_heads * d
    n_heads = Hd // d
    scale = scale_ref[...]
    inv_sqrt_md = float(m * d) ** -0.5
    inv_sqrt_d = float(d) ** -0.5

    # ---- RMSNorm #1 (norm over the whole (m, d) block = one batch element) ----
    ff1 = jnp.sqrt(jnp.sum(x * x)) * inv_sqrt_md
    x1 = scale * (x / ff1)

    # ---- fused QKV projection, all heads, one wide MXU matmul (N = 5*Hd) ----
    qkv = jnp.dot(x1, wbig_ref[...], preferred_element_type=jnp.float32)  # (m, 5*Hd)
    # RoPE: pair swap is pre-folded into wbig; apply cos/sin tables to [q|k]
    qk_rot = qkv[:, :2 * Hd] * cos_ref[...] + qkv[:, 2 * Hd:4 * Hd] * sin_ref[...]

    # causal mask, computed once for all heads
    row = jax.lax.broadcasted_iota(jnp.int32, (m, m), 0)
    col = jax.lax.broadcasted_iota(jnp.int32, (m, m), 1)
    causal = col <= row

    heads = []
    for h in range(n_heads):          # static unroll: heads fused in one grid step
        q_h = qk_rot[:, h * d:(h + 1) * d] * inv_sqrt_d   # fold 1/sqrt(d) into q
        k_h = qk_rot[:, Hd + h * d:Hd + (h + 1) * d]
        v_h = qkv[:, 4 * Hd + h * d:4 * Hd + (h + 1) * d]
        s = jax.lax.dot_general(q_h, k_h,
                                dimension_numbers=(((1,), (1,)), ((), ())),
                                preferred_element_type=jnp.float32)       # (m, m)
        s = jnp.where(causal, s, -1e30)
        s = s - jnp.max(s, axis=-1, keepdims=True)
        p = jnp.exp(s)
        p = p * pl.reciprocal(jnp.sum(p, axis=-1, keepdims=True), approx=True)
        heads.append(jnp.dot(p, v_h, preferred_element_type=jnp.float32))  # (m, d)

    head_cat = jnp.concatenate(heads, axis=-1)                             # (m, Hd)
    attn = jnp.dot(head_cat, wo_ref[...],
                   preferred_element_type=jnp.float32) + bo_ref[...]
    x2 = x1 + attn      # residual  # TODO(synk): attention/output dropout = identity

    # ---- RMSNorm #2 ----
    ff2 = jnp.sqrt(jnp.sum(x2 * x2)) * inv_sqrt_md
    x3 = scale * (x2 / ff2)

    # ---- FFN(ReLU) + residual + vocab projection, single output store ----
    hmid = jnp.dot(x3, w1_ref[...], preferred_element_type=jnp.float32) + b1_ref[...]
    y = x3 + jnp.maximum(hmid, 0.0)
    o_ref[0] = jnp.dot(y, wl_ref[...], preferred_element_type=jnp.float32) + bl_ref[...]


def rope_model_forward(params, idx):
    b, m = idx.shape
    d = params["emb"].shape[1]
    vocab = params["wl_t"].shape[1]
    Hd = params["wo_t"].shape[0]
    fp = prepare_fused(params, m)
    x = jnp.take(params["emb"], idx, axis=0)       # embedding gather (glue, host op)

    return pl.pallas_call(
        _fused_forward_kernel,
        out_shape=jax.ShapeDtypeStruct((b, m, vocab), jnp.float32),
        grid=(b,),
        in_specs=[
            pl.BlockSpec((1, m, d), lambda i: (i, 0, 0)),      # x
            pl.BlockSpec((m, d), lambda i: (0, 0)),            # rms scale
            pl.BlockSpec((m, 2 * Hd), lambda i: (0, 0)),       # cos table
            pl.BlockSpec((m, 2 * Hd), lambda i: (0, 0)),       # sin table
            pl.BlockSpec((d, 5 * Hd), lambda i: (0, 0)),       # fused QKV(+swap) W
            pl.BlockSpec((Hd, d), lambda i: (0, 0)),           # Wo^T
            pl.BlockSpec((1, d), lambda i: (0, 0)),            # bo
            pl.BlockSpec((d, d), lambda i: (0, 0)),            # W1^T
            pl.BlockSpec((1, d), lambda i: (0, 0)),            # b1
            pl.BlockSpec((d, vocab), lambda i: (0, 0)),        # Wlast^T
            pl.BlockSpec((1, vocab), lambda i: (0, 0)),        # blast
        ],
        out_specs=pl.BlockSpec((1, m, vocab), lambda i: (i, 0, 0)),
        compiler_params=pltpu.CompilerParams(dimension_semantics=("parallel",)),
    )(x, fp["scale"], fp["cos2"], fp["sin2"], fp["wbig"], fp["wo"], fp["bo"],
      fp["w1"], fp["b1"], fp["wl"], fp["bl"])


# ----------------------------- pure-JAX reference ------------------------------
def forward_reference(params, idx):
    scale = params["scale"]
    x = params["emb"][idx]
    b, m, d = x.shape

    def rms(x):
        ff = jnp.linalg.norm(x.reshape(b, -1), axis=-1) * (m * d) ** -0.5
        return scale[:m][None] * (x / ff[:, None, None])

    x = rms(x)
    R = params["R"][:m]
    heads = []
    for h in range(params["wq_t"].shape[0]):
        q = x @ params["wq_t"][h]
        k = x @ params["wk_t"][h]
        v = x @ params["wv_t"][h]
        q_rot = jnp.einsum("bpd,pde->bpe", q, R)
        k_rot = jnp.einsum("bpd,pde->bpe", k, R)
        s = jnp.einsum("bqd,bkd->bqk", q_rot, k_rot) / np.sqrt(d)
        mask = np.tril(np.ones((m, m), dtype=bool))
        s = jnp.where(mask, s, -1e30)
        p = jax.nn.softmax(s, axis=-1)
        heads.append(p @ v)
    cat = jnp.concatenate(heads, axis=-1)
    attn = cat @ params["wo_t"] + params["bo"][0]
    x = x + attn
    x = rms(x)
    x = x + jax.nn.relu(x @ params["w1_t"] + params["b1"][0])
    return x @ params["wl_t"] + params["bl"][0]


# ----------------------------- main --------------------------------------------
if __name__ == "__main__":
    config = dict(vocab_size=32, d_model=32, context_window=16, n_heads=2)
    B, M = 2, config["context_window"]
    V, D, H = config["vocab_size"], config["d_model"], config["n_heads"]

    key = jax.random.PRNGKey(0)
    ks = jax.random.split(key, 10)

    params = {
        "emb":   jax.random.normal(ks[0], (V, D), jnp.float32) * 0.02,
        "scale": jnp.ones((config["context_window"], D), jnp.float32),  # RMSNorm scale
        "R":     get_rotary_matrix(config["context_window"], D),        # reference only
        # per-head W_q^T / W_k^T / W_v^T, stacked: (H, D, D)
        "wq_t":  jax.random.normal(ks[1], (H, D, D), jnp.float32) * 0.02,
        "wk_t":  jax.random.normal(ks[2], (H, D, D), jnp.float32) * 0.02,
        "wv_t":  jax.random.normal(ks[3], (H, D, D), jnp.float32) * 0.02,
        # output Linear(H*D -> D): W_o^T stored as (H*D, D); bias (1, D)
        "wo_t":  jax.random.normal(ks[4], (H * D, D), jnp.float32) * 0.02,
        "bo":    jax.random.normal(ks[5], (1, D), jnp.float32) * 0.02,
        # FFN Linear(D -> D) + ReLU
        "w1_t":  jax.random.normal(ks[6], (D, D), jnp.float32) * 0.02,
        "b1":    jax.random.normal(ks[7], (1, D), jnp.float32) * 0.02,
        # last Linear(D -> V)
        "wl_t":  jax.random.normal(ks[8], (D, V), jnp.float32) * 0.02,
        "bl":    jax.random.normal(ks[9], (1, V), jnp.float32) * 0.02,
    }

    idx = jax.random.randint(jax.random.PRNGKey(42), (B, M), 0, V, dtype=jnp.int32)

    logits = rope_model_forward(params, idx)
    jax.block_until_ready(logits)

    ref = forward_reference(params, idx)
    assert logits.shape == (B, M, V)
    assert np.allclose(np.asarray(logits), np.asarray(ref), rtol=1e-2, atol=1e-2), (
        "mismatch vs reference")

    print("KERNEL_OK")
</pallas_src>

<mosaic_0001>
module attributes {stable_mosaic.version = 11 : i64} {
  func.func @_fused_forward_kernel(%arg0: i32, %arg1: memref<1x16x32xf32, #tpu.memory_space<vmem>>, %arg2: memref<16x32xf32, #tpu.memory_space<vmem>>, %arg3: memref<16x128xf32, #tpu.memory_space<vmem>>, %arg4: memref<16x128xf32, #tpu.memory_space<vmem>>, %arg5: memref<32x320xf32, #tpu.memory_space<vmem>>, %arg6: memref<64x32xf32, #tpu.memory_space<vmem>>, %arg7: memref<1x32xf32, #tpu.memory_space<vmem>>, %arg8: memref<32x32xf32, #tpu.memory_space<vmem>>, %arg9: memref<1x32xf32, #tpu.memory_space<vmem>>, %arg10: memref<32x32xf32, #tpu.memory_space<vmem>>, %arg11: memref<1x32xf32, #tpu.memory_space<vmem>>, %arg12: memref<1x16x32xf32, #tpu.memory_space<vmem>>) attributes {dimension_semantics = [#tpu.dimension_semantics<parallel>], iteration_bounds = array<i64: 2>, scalar_prefetch = 0 : i64, scratch_operands = 0 : i64, tpu.core_type = #tpu.core_type<tc>, window_params = [{transform_indices = @transform_0, window_bounds = array<i64: 1, 16, 32>}, {pipeline_mode = #tpu.pipeline_mode<synchronous>, transform_indices = @transform_1, window_bounds = array<i64: 16, 32>}, {pipeline_mode = #tpu.pipeline_mode<synchronous>, transform_indices = @transform_2, window_bounds = array<i64: 16, 128>}, {pipeline_mode = #tpu.pipeline_mode<synchronous>, transform_indices = @transform_3, window_bounds = array<i64: 16, 128>}, {pipeline_mode = #tpu.pipeline_mode<synchronous>, transform_indices = @transform_4, window_bounds = array<i64: 32, 320>}, {pipeline_mode = #tpu.pipeline_mode<synchronous>, transform_indices = @transform_5, window_bounds = array<i64: 64, 32>}, {pipeline_mode = #tpu.pipeline_mode<synchronous>, transform_indices = @transform_6, window_bounds = array<i64: 1, 32>}, {pipeline_mode = #tpu.pipeline_mode<synchronous>, transform_indices = @transform_7, window_bounds = array<i64: 32, 32>}, {pipeline_mode = #tpu.pipeline_mode<synchronous>, transform_indices = @transform_8, window_bounds = array<i64: 1, 32>}, {pipeline_mode = #tpu.pipeline_mode<synchronous>, transform_indices = @transform_9, window_bounds = array<i64: 32, 32>}, {pipeline_mode = #tpu.pipeline_mode<synchronous>, transform_indices = @transform_10, window_bounds = array<i64: 1, 32>}, {transform_indices = @transform_11, window_bounds = array<i64: 1, 16, 32>}]} {
    %c0 = arith.constant 0 : index
    %c0_0 = arith.constant 0 : index
    %c0_1 = arith.constant 0 : index
    %0 = vector.load %arg1[%c0, %c0_0, %c0_1] : memref<1x16x32xf32, #tpu.memory_space<vmem>>, vector<1x16x32xf32>
    %1 = vector.shape_cast %0 : vector<1x16x32xf32> to vector<16x32xf32>
    %c0_2 = arith.constant 0 : index
    %c0_3 = arith.constant 0 : index
    %2 = vector.load %arg2[%c0_2, %c0_3] : memref<16x32xf32, #tpu.memory_space<vmem>>, vector<16x32xf32>
    %3 = arith.mulf %1, %1 : vector<16x32xf32>
    %4 = vector.shape_cast %3 : vector<16x32xf32> to vector<1x16x32xf32>
    %cst = arith.constant dense<0.000000e+00> : vector<1xf32>
    %5 = vector.multi_reduction <add>, %4, %cst [1, 2] : vector<1x16x32xf32> to vector<1xf32>
    %6 = vector.shape_cast %5 : vector<1xf32> to vector<1x1x1xf32>
    %7 = vector.extract %6[0, 0, 0] : f32 from vector<1x1x1xf32>
    %8 = math.sqrt %7 : f32
    %cst_4 = arith.constant 0.0441941731 : f32
    %9 = arith.mulf %8, %cst_4 : f32
    %10 = vector.broadcast %9 : f32 to vector<16x32xf32>
    %11 = arith.divf %1, %10 : vector<16x32xf32>
    %12 = arith.mulf %2, %11 : vector<16x32xf32>
    %c0_5 = arith.constant 0 : index
    %c0_6 = arith.constant 0 : index
    %13 = vector.load %arg5[%c0_5, %c0_6] : memref<32x320xf32, #tpu.memory_space<vmem>>, vector<32x320xf32>
    %cst_7 = arith.constant dense<0.000000e+00> : vector<16x320xf32>
    %14 = tpu.matmul %12, %13, %cst_7 {dimension_numbers = #tpu.dot_dimension_numbers<[1], [0], [0], [1], [0, 0, 1, 1], [], []>} : vector<16x32xf32>, vector<32x320xf32>, vector<16x320xf32> -> vector<16x320xf32>
    %15 = vector.extract_strided_slice %14 {offsets = [0, 0], sizes = [16, 128], strides = [1, 1]} : vector<16x320xf32> to vector<16x128xf32>
    %c0_8 = arith.constant 0 : index
    %c0_9 = arith.constant 0 : index
    %16 = vector.load %arg3[%c0_8, %c0_9] : memref<16x128xf32, #tpu.memory_space<vmem>>, vector<16x128xf32>
    %17 = arith.mulf %15, %16 : vector<16x128xf32>
    %18 = vector.extract_strided_slice %14 {offsets = [0, 128], sizes = [16, 128], strides = [1, 1]} : vector<16x320xf32> to vector<16x128xf32>
    %c0_10 = arith.constant 0 : index
    %c0_11 = arith.constant 0 : index
    %19 = vector.load %arg4[%c0_10, %c0_11] : memref<16x128xf32, #tpu.memory_space<vmem>>, vector<16x128xf32>
    %20 = arith.mulf %18, %19 : vector<16x128xf32>
    %21 = arith.addf %17, %20 : vector<16x128xf32>
    %22 = tpu.iota {dimensions = array<i32: 0>} : vector<16x16xi32>
    %23 = tpu.iota {dimensions = array<i32: 1>} : vector<16x16xi32>
    %24 = arith.cmpi sle, %23, %22 : vector<16x16xi32>
    %25 = vector.extract_strided_slice %21 {offsets = [0, 0], sizes = [16, 32], strides = [1, 1]} : vector<16x128xf32> to vector<16x32xf32>
    %cst_12 = arith.constant 0.176776692 : f32
    %26 = vector.broadcast %cst_12 : f32 to vector<16x32xf32>
    %27 = arith.mulf %25, %26 : vector<16x32xf32>
    %28 = vector.extract_strided_slice %21 {offsets = [0, 64], sizes = [16, 32], strides = [1, 1]} : vector<16x128xf32> to vector<16x32xf32>
    %29 = vector.extract_strided_slice %14 {offsets = [0, 256], sizes = [16, 32], strides = [1, 1]} : vector<16x320xf32> to vector<16x32xf32>
    %cst_13 = arith.constant dense<0.000000e+00> : vector<16x16xf32>
    %30 = tpu.matmul %27, %28, %cst_13 {dimension_numbers = #tpu.dot_dimension_numbers<[1], [1], [0], [0], [0, 0, 1, 0], [], []>} : vector<16x32xf32>, vector<16x32xf32>, vector<16x16xf32> -> vector<16x16xf32>
    %cst_14 = arith.constant -1.000000e+30 : f32
    %31 = vector.broadcast %cst_14 : f32 to vector<16x16xf32>
    %32 = arith.select %24, %30, %31 : vector<16x16xi1>, vector<16x16xf32>
    %cst_15 = arith.constant dense<0xFF800000> : vector<16xf32>
    %33 = vector.multi_reduction <maximumf>, %32, %cst_15 [1] : vector<16x16xf32> to vector<16xf32>
    %34 = vector.shape_cast %33 : vector<16xf32> to vector<16x1xf32>
    %35 = vector.broadcast %34 : vector<16x1xf32> to vector<16x16xf32>
    %36 = arith.subf %32, %35 : vector<16x16xf32>
    %37 = math.exp %36 : vector<16x16xf32>
    %cst_16 = arith.constant dense<0.000000e+00> : vector<16xf32>
    %38 = vector.multi_reduction <add>, %37, %cst_16 [1] : vector<16x16xf32> to vector<16xf32>
    %39 = vector.shape_cast %38 : vector<16xf32> to vector<16x1xf32>
    %40 = tpu.reciprocal %39 {approx = true} : vector<16x1xf32> -> vector<16x1xf32>
    %41 = vector.broadcast %40 : vector<16x1xf32> to vector<16x16xf32>
    %42 = arith.mulf %37, %41 : vector<16x16xf32>
    %cst_17 = arith.constant dense<0.000000e+00> : vector<16x32xf32>
    %43 = tpu.matmul %42, %29, %cst_17 {dimension_numbers = #tpu.dot_dimension_numbers<[1], [0], [0], [1], [0, 0, 1, 1], [], []>} : vector<16x16xf32>, vector<16x32xf32>, vector<16x32xf32> -> vector<16x32xf32>
    %44 = vector.extract_strided_slice %21 {offsets = [0, 32], sizes = [16, 32], strides = [1, 1]} : vector<16x128xf32> to vector<16x32xf32>
    %cst_18 = arith.constant 0.176776692 : f32
    %45 = vector.broadcast %cst_18 : f32 to vector<16x32xf32>
    %46 = arith.mulf %44, %45 : vector<16x32xf32>
    %47 = vector.extract_strided_slice %21 {offsets = [0, 96], sizes = [16, 32], strides = [1, 1]} : vector<16x128xf32> to vector<16x32xf32>
    %48 = vector.extract_strided_slice %14 {offsets = [0, 288], sizes = [16, 32], strides = [1, 1]} : vector<16x320xf32> to vector<16x32xf32>
    %cst_19 = arith.constant dense<0.000000e+00> : vector<16x16xf32>
    %49 = tpu.matmul %46, %47, %cst_19 {dimension_numbers = #tpu.dot_dimension_numbers<[1], [1], [0], [0], [0, 0, 1, 0], [], []>} : vector<16x32xf32>, vector<16x32xf32>, vector<16x16xf32> -> vector<16x16xf32>
    %cst_20 = arith.constant -1.000000e+30 : f32
    %50 = vector.broadcast %cst_20 : f32 to vector<16x16xf32>
    %51 = arith.select %24, %49, %50 : vector<16x16xi1>, vector<16x16xf32>
    %cst_21 = arith.constant dense<0xFF800000> : vector<16xf32>
    %52 = vector.multi_reduction <maximumf>, %51, %cst_21 [1] : vector<16x16xf32> to vector<16xf32>
    %53 = vector.shape_cast %52 : vector<16xf32> to vector<16x1xf32>
    %54 = vector.broadcast %53 : vector<16x1xf32> to vector<16x16xf32>
    %55 = arith.subf %51, %54 : vector<16x16xf32>
    %56 = math.exp %55 : vector<16x16xf32>
    %cst_22 = arith.constant dense<0.000000e+00> : vector<16xf32>
    %57 = vector.multi_reduction <add>, %56, %cst_22 [1] : vector<16x16xf32> to vector<16xf32>
    %58 = vector.shape_cast %57 : vector<16xf32> to vector<16x1xf32>
    %59 = tpu.reciprocal %58 {approx = true} : vector<16x1xf32> -> vector<16x1xf32>
    %60 = vector.broadcast %59 : vector<16x1xf32> to vector<16x16xf32>
    %61 = arith.mulf %56, %60 : vector<16x16xf32>
    %cst_23 = arith.constant dense<0.000000e+00> : vector<16x32xf32>
    %62 = tpu.matmul %61, %48, %cst_23 {dimension_numbers = #tpu.dot_dimension_numbers<[1], [0], [0], [1], [0, 0, 1, 1], [], []>} : vector<16x16xf32>, vector<16x32xf32>, vector<16x32xf32> -> vector<16x32xf32>
    %63 = tpu.concatenate %43, %62 in 1 : vector<16x32xf32>, vector<16x32xf32> -> vector<16x64xf32>
    %c0_24 = arith.constant 0 : index
    %c0_25 = arith.constant 0 : index
    %64 = vector.load %arg6[%c0_24, %c0_25] : memref<64x32xf32, #tpu.memory_space<vmem>>, vector<64x32xf32>
    %cst_26 = arith.constant dense<0.000000e+00> : vector<16x32xf32>
    %65 = tpu.matmul %63, %64, %cst_26 {dimension_numbers = #tpu.dot_dimension_numbers<[1], [0], [0], [1], [0, 0, 1, 1], [], []>} : vector<16x64xf32>, vector<64x32xf32>, vector<16x32xf32> -> vector<16x32xf32>
    %c0_27 = arith.constant 0 : index
    %c0_28 = arith.constant 0 : index
    %66 = vector.load %arg7[%c0_27, %c0_28] : memref<1x32xf32, #tpu.memory_space<vmem>>, vector<1x32xf32>
    %67 = vector.broadcast %66 : vector<1x32xf32> to vector<16x32xf32>
    %68 = arith.addf %65, %67 : vector<16x32xf32>
    %69 = arith.addf %12, %68 : vector<16x32xf32>
    %70 = arith.mulf %69, %69 : vector<16x32xf32>
    %71 = vector.shape_cast %70 : vector<16x32xf32> to vector<1x16x32xf32>
    %cst_29 = arith.constant dense<0.000000e+00> : vector<1xf32>
    %72 = vector.multi_reduction <add>, %71, %cst_29 [1, 2] : vector<1x16x32xf32> to vector<1xf32>
    %73 = vector.shape_cast %72 : vector<1xf32> to vector<1x1x1xf32>
    %74 = vector.extract %73[0, 0, 0] : f32 from vector<1x1x1xf32>
    %75 = math.sqrt %74 : f32
    %cst_30 = arith.constant 0.0441941731 : f32
    %76 = arith.mulf %75, %cst_30 : f32
    %77 = vector.broadcast %76 : f32 to vector<16x32xf32>
    %78 = arith.divf %69, %77 : vector<16x32xf32>
    %79 = arith.mulf %2, %78 : vector<16x32xf32>
    %c0_31 = arith.constant 0 : index
    %c0_32 = arith.constant 0 : index
    %80 = vector.load %arg8[%c0_31, %c0_32] : memref<32x32xf32, #tpu.memory_space<vmem>>, vector<32x32xf32>
    %cst_33 = arith.constant dense<0.000000e+00> : vector<16x32xf32>
    %81 = tpu.matmul %79, %80, %cst_33 {dimension_numbers = #tpu.dot_dimension_numbers<[1], [0], [0], [1], [0, 0, 1, 1], [], []>} : vector<16x32xf32>, vector<32x32xf32>, vector<16x32xf32> -> vector<16x32xf32>
    %c0_34 = arith.constant 0 : index
    %c0_35 = arith.constant 0 : index
    %82 = vector.load %arg9[%c0_34, %c0_35] : memref<1x32xf32, #tpu.memory_space<vmem>>, vector<1x32xf32>
    %83 = vector.broadcast %82 : vector<1x32xf32> to vector<16x32xf32>
    %84 = arith.addf %81, %83 : vector<16x32xf32>
    %cst_36 = arith.constant 0.000000e+00 : f32
    %85 = vector.broadcast %cst_36 : f32 to vector<16x32xf32>
    %86 = arith.maximumf %84, %85 : vector<16x32xf32>
    %87 = arith.addf %79, %86 : vector<16x32xf32>
    %c0_37 = arith.constant 0 : index
    %c0_38 = arith.constant 0 : index
    %88 = vector.load %arg10[%c0_37, %c0_38] : memref<32x32xf32, #tpu.memory_space<vmem>>, vector<32x32xf32>
    %cst_39 = arith.constant dense<0.000000e+00> : vector<16x32xf32>
    %89 = tpu.matmul %87, %88, %cst_39 {dimension_numbers = #tpu.dot_dimension_numbers<[1], [0], [0], [1], [0, 0, 1, 1], [], []>} : vector<16x32xf32>, vector<32x32xf32>, vector<16x32xf32> -> vector<16x32xf32>
    %c0_40 = arith.constant 0 : index
    %c0_41 = arith.constant 0 : index
    %90 = vector.load %arg11[%c0_40, %c0_41] : memref<1x32xf32, #tpu.memory_space<vmem>>, vector<1x32xf32>
    %91 = vector.broadcast %90 : vector<1x32xf32> to vector<16x32xf32>
    %92 = arith.addf %89, %91 : vector<16x32xf32>
    %c0_42 = arith.constant 0 : index
    %c0_43 = arith.constant 0 : index
    %c0_44 = arith.constant 0 : index
    %93 = vector.load %arg12[%c0_42, %c0_43, %c0_44] : memref<1x16x32xf32, #tpu.memory_space<vmem>>, vector<1x16x32xf32>
    %94 = vector.shape_cast %93 : vector<1x16x32xf32> to vector<16x32xf32>
    %95 = vector.shape_cast %92 : vector<16x32xf32> to vector<1x16x32xf32>
    tpu.vector_store %arg12[%c0_42, %c0_43, %c0_44], %95 {strides = array<i32>} : memref<1x16x32xf32, #tpu.memory_space<vmem>>, vector<1x16x32xf32>,
    return
  }
  func.func @transform_0(%arg0: i32) -> (i32, i32, i32) {
    %c0_i32 = arith.constant 0 : i32
    %c0_i32_0 = arith.constant 0 : i32
    %c0_i32_1 = arith.constant 0 : i32
    return %arg0, %c0_i32, %c0_i32_0 : i32, i32, i32
  }
  func.func @transform_1(%arg0: i32) -> (i32, i32) {
    %c0_i32 = arith.constant 0 : i32
    %c0_i32_0 = arith.constant 0 : i32
    %c0_i32_1 = arith.constant 0 : i32
    return %c0_i32, %c0_i32_0 : i32, i32
  }
  func.func @transform_2(%arg0: i32) -> (i32, i32) {
    %c0_i32 = arith.constant 0 : i32
    %c0_i32_0 = arith.constant 0 : i32
    %c0_i32_1 = arith.constant 0 : i32
    return %c0_i32, %c0_i32_0 : i32, i32
  }
  func.func @transform_3(%arg0: i32) -> (i32, i32) {
    %c0_i32 = arith.constant 0 : i32
    %c0_i32_0 = arith.constant 0 : i32
    %c0_i32_1 = arith.constant 0 : i32
    return %c0_i32, %c0_i32_0 : i32, i32
  }
  func.func @transform_4(%arg0: i32) -> (i32, i32) {
    %c0_i32 = arith.constant 0 : i32
    %c0_i32_0 = arith.constant 0 : i32
    %c0_i32_1 = arith.constant 0 : i32
    return %c0_i32, %c0_i32_0 : i32, i32
  }
  func.func @transform_5(%arg0: i32) -> (i32, i32) {
    %c0_i32 = arith.constant 0 : i32
    %c0_i32_0 = arith.constant 0 : i32
    %c0_i32_1 = arith.constant 0 : i32
    return %c0_i32, %c0_i32_0 : i32, i32
  }
  func.func @transform_6(%arg0: i32) -> (i32, i32) {
    %c0_i32 = arith.constant 0 : i32
    %c0_i32_0 = arith.constant 0 : i32
    %c0_i32_1 = arith.constant 0 : i32
    return %c0_i32, %c0_i32_0 : i32, i32
  }
  func.func @transform_7(%arg0: i32) -> (i32, i32) {
    %c0_i32 = arith.constant 0 : i32
    %c0_i32_0 = arith.constant 0 : i32
    %c0_i32_1 = arith.constant 0 : i32
    return %c0_i32, %c0_i32_0 : i32, i32
  }
  func.func @transform_8(%arg0: i32) -> (i32, i32) {
    %c0_i32 = arith.constant 0 : i32
    %c0_i32_0 = arith.constant 0 : i32
    %c0_i32_1 = arith.constant 0 : i32
    return %c0_i32, %c0_i32_0 : i32, i32
  }
  func.func @transform_9(%arg0: i32) -> (i32, i32) {
    %c0_i32 = arith.constant 0 : i32
    %c0_i32_0 = arith.constant 0 : i32
    %c0_i32_1 = arith.constant 0 : i32
    return %c0_i32, %c0_i32_0 : i32, i32
  }
  func.func @transform_10(%arg0: i32) -> (i32, i32) {
    %c0_i32 = arith.constant 0 : i32
    %c0_i32_0 = arith.constant 0 : i32
    %c0_i32_1 = arith.constant 0 : i32
    return %c0_i32, %c0_i32_0 : i32, i32
  }
  func.func @transform_11(%arg0: i32) -> (i32, i32, i32) {
    %c0_i32 = arith.constant 0 : i32
    %c0_i32_0 = arith.constant 0 : i32
    %c0_i32_1 = arith.constant 0 : i32
    return %arg0, %c0_i32, %c0_i32_0 : i32, i32, i32
  }
}

</mosaic_0001>

<llo_original>
// kernel: tpu_custom_call.1
$region0: #{tpu_custom_call.1}
  #allocation0 [shape = 'u32[]', space=smem, size = 0x4, offset = 0x4, fixed_abs, tag = 'smem constant byte address 0x4 - core index']
  #allocation1 [shape = 'u32[144,128]{1,0:T(1,128)}', space=vmem, size = 0x12000, scoped, tag = 'internal scratch']
  %s0 = inlined_call_operand.hbm [shape: f32[2,16,32], index: 0, kind: input, shape index: {}]
  %s1 = inlined_call_operand.hbm [shape: f32[16,32], index: 1, kind: input, shape index: {}]
  %s2 = inlined_call_operand.hbm [shape: f32[16,128], index: 2, kind: input, shape index: {}]
  %s3 = inlined_call_operand.hbm [shape: f32[16,128], index: 3, kind: input, shape index: {}]
  %s4 = inlined_call_operand.vmem [shape: f32[32,320], index: 4, kind: input, shape index: {}]
  %s5 = inlined_call_operand.vmem [shape: f32[64,32], index: 5, kind: input, shape index: {}]
  %s6 = inlined_call_operand.vmem [shape: f32[1,32], index: 6, kind: input, shape index: {}]
  %s7 = inlined_call_operand.hbm [shape: f32[32,32], index: 7, kind: input, shape index: {}]
  %s8 = inlined_call_operand.vmem [shape: f32[1,32], index: 8, kind: input, shape index: {}]
  %s9 = inlined_call_operand.hbm [shape: f32[32,32], index: 9, kind: input, shape index: {}]
  %s10 = inlined_call_operand.vmem [shape: f32[1,32], index: 10, kind: input, shape index: {}]
  %s11 = inlined_call_operand.hbm [shape: f32[2,16,32], index: 11, kind: output, shape index: {}]
  %s12 = sld [smem:[#allocation0]]
  $region101: #{tpu_custom_call.1} parent=0
    _
  %s14 = ssub.s32 1, %s12
  %s15 = scalar_select 0, %s14, %s12
  $region1: #{tpu_custom_call.1} parent=0
    #allocation2 [shape = 'u8[16384]{0}', space=vmem, size = 0x4000, scoped, tag = 'input window, operand 0']
    #allocation3 [shape = 's32[2]{0}', space=sflag, size = 0x8, scoped, tag = 'scoped memory for tpu_custom_call.1']
    #allocation4 [shape = 's32[2]{0}', space=sflag, size = 0x8, scoped, tag = 'scoped memory for tpu_custom_call.1']
    #allocation5 [shape = 'u8[8192]{0}', space=vmem, size = 0x2000, scoped, tag = 'input window, operand 1, single buffered']
    #allocation6 [shape = 's32[1]{0}', space=sflag, size = 0x4, scoped, tag = 'scoped memory for tpu_custom_call.1']
    #allocation7 [shape = 'u8[8192]{0}', space=vmem, size = 0x2000, scoped, tag = 'input window, operand 2, single buffered']
    #allocation8 [shape = 'u8[8192]{0}', space=vmem, size = 0x2000, scoped, tag = 'input window, operand 3, single buffered']
    #allocation9 [shape = 's32[1]{0}', space=sflag, size = 0x4, scoped, tag = 'scoped memory for tpu_custom_call.1']
    #allocation10 [shape = 'u8[16384]{0}', space=vmem, size = 0x4000, scoped, tag = 'input window, operand 7, single buffered']
    #allocation11 [shape = 'u8[16384]{0}', space=vmem, size = 0x4000, scoped, tag = 'input window, operand 9, single buffered']
    #allocation12 [shape = 's32[1]{0}', space=sflag, size = 0x4, scoped, tag = 'scoped memory for tpu_custom_call.1']
    #allocation13 [shape = 'u8[16384]{0}', space=vmem, size = 0x4000, scoped, tag = 'output window, operand 0']
    %16 = vsyncpa [#allocation3], 0
    %s17 = scalar_lea.sflag [#allocation3], 1
    %18 = vsyncpa %s17, 0
    %19 = vsyncpa [#allocation6], 0
    %20 = vsyncpa [#allocation9], 0
    %21 = vsyncpa [#allocation12], 0
    %22 = vsyncpa [#allocation4], 0
    %s23 = scalar_lea.sflag [#allocation4], 1
    %24 = vsyncpa %s23, 0
    loop: start=0, step=1, limit=4
    $region2: #{tpu_custom_call.1} parent=1 // loop_pre_header
      _
    $region3: #{tpu_custom_call.1} parent=1 // loop_header
      %s26 = sphi 0, %s30
      %p27 = scmp.ge.s32.totalorder %s26, 4
      %s36 = sphi 0, %s38
      %s39 = sphi 0, %s36
      %s40 = sphi 0, %s39
      %s56 = sphi 0, %s40
      %s60 = sphi 0, %s60
      %s62 = sphi 0, %s60
      %s63 = sphi 0, %s62
      %s77 = sphi 0, %s63
      %s81 = sphi 0, %s81
      %s83 = sphi 0, %s81
      %s84 = sphi 0, %s83
      %s98 = sphi 0, %s84
      %s102 = sphi 0, %s102
      %s104 = sphi 0, %s102
      %s105 = sphi 0, %s104
      %s119 = sphi 0, %s105
      %s123 = sphi 0, %s123
      %s125 = sphi 0, %s123
      %s126 = sphi 0, %s125
      %s140 = sphi 0, %s126
      %s144 = sphi 0, %s144
      %s146 = sphi 0, %s144
      %s147 = sphi 0, %s146
      %s161 = sphi 0, %s147
      %s165 = sphi 0, %s165
      %s167 = sphi 0, %s165
      %s168 = sphi 0, %s167
      %s182 = sphi 0, %s168
      %s186 = sphi 0, %s186
      %s188 = sphi 0, %s186
      %s189 = sphi 0, %s188
      %s203 = sphi 0, %s189
      %s207 = sphi 0, %s207
      %s209 = sphi 0, %s207
      %s210 = sphi 0, %s209
      %s224 = sphi 0, %s210
      %s228 = sphi 0, %s228
      %s230 = sphi 0, %s228
      %s231 = sphi 0, %s230
      %s245 = sphi 0, %s231
      %s249 = sphi 0, %s249
      %s251 = sphi 0, %s249
      %s252 = sphi 0, %s251
      %s266 = sphi 0, %s252
      %s272 = sphi 0, %s274
      %s275 = sphi 0, %s272
      %s276 = sphi 0, %s275
      %s292 = sphi 0, %s276
    $region4: #{tpu_custom_call.1} parent=1 // loop_header_branch
      %29 = sbr.rel (%p27) target = $region8
    $region5: #{tpu_custom_call.1} parent=1 // loop_body
      %s31 = ssub.s32 %s26, 1
      %s32 = ssub.s32 %s26, 2
      %s33 = sadd.s32 %s26, 1
      %s34 = ssub.s32 %s26, %s33
      %p35 = scmp.eq.s32.totalorder %s34, 0
      %s37 = sadd.s32 %s36, 1
      %s38 = scalar_select %p35, %s36, %s37
      %p41 = pneg %p35
      %p42 = scmp.eq.s32.totalorder %s26, 1
      %p43 = por %p41, %p42
      %p44 = scmp.ne.s32.totalorder %s36, %s39
      %p45 = scmp.eq.s32.totalorder %s26, 0
      %p46 = por %p44, %p45
      %p47 = scmp.ne.s32.totalorder %s36, %s39
      %p48 = scmp.eq.s32.totalorder %s31, 1
      %p49 = por %p47, %p48
      %p50 = scmp.ne.s32.totalorder %s39, %s40
      %p51 = scmp.eq.s32.totalorder %s31, 0
      %p52 = por %p50, %p51
      %p53 = scmp.ne.s32.totalorder %s39, %s40
      %p54 = scmp.eq.s32.totalorder %s32, 1
      %p55 = por %p53, %p54
      %p57 = scmp.ne.s32.totalorder %s40, %s56
      %p58 = scmp.eq.s32.totalorder %s32, 0
      %p59 = por %p57, %p58
      %s61 = sadd.s32 %s60, 1
      %p64 = scmp.eq.s32.totalorder %s26, 1
      %p65 = scmp.ne.s32.totalorder %s60, %s62
      %p66 = scmp.eq.s32.totalorder %s26, 0
      %p67 = por %p65, %p66
      %p68 = scmp.ne.s32.totalorder %s60, %s62
      %p69 = scmp.eq.s32.totalorder %s31, 1
      %p70 = por %p68, %p69
      %p71 = scmp.ne.s32.totalorder %s62, %s63
      %p72 = scmp.eq.s32.totalorder %s31, 0
      %p73 = por %p71, %p72
      %p74 = scmp.ne.s32.totalorder %s62, %s63
      %p75 = scmp.eq.s32.totalorder %s32, 1
      %p76 = por %p74, %p75
      %p78 = scmp.ne.s32.totalorder %s63, %s77
      %p79 = scmp.eq.s32.totalorder %s32, 0
      %p80 = por %p78, %p79
      %s82 = sadd.s32 %s81, 1
      %p85 = scmp.eq.s32.totalorder %s26, 1
      %p86 = scmp.ne.s32.totalorder %s81, %s83
      %p87 = scmp.eq.s32.totalorder %s26, 0
      %p88 = por %p86, %p87
      %p89 = scmp.ne.s32.totalorder %s81, %s83
      %p90 = scmp.eq.s32.totalorder %s31, 1
      %p91 = por %p89, %p90
      %p92 = scmp.ne.s32.totalorder %s83, %s84
      %p93 = scmp.eq.s32.totalorder %s31, 0
      %p94 = por %p92, %p93
      %p95 = scmp.ne.s32.totalorder %s83, %s84
      %p96 = scmp.eq.s32.totalorder %s32, 1
      %p97 = por %p95, %p96
      %p99 = scmp.ne.s32.totalorder %s84, %s98
      %p100 = scmp.eq.s32.totalorder %s32, 0
      %p101 = por %p99, %p100
      %s103 = sadd.s32 %s102, 1
      %p106 = scmp.eq.s32.totalorder %s26, 1
      %p107 = scmp.ne.s32.totalorder %s102, %s104
      %p108 = scmp.eq.s32.totalorder %s26, 0
      %p109 = por %p107, %p108
      %p110 = scmp.ne.s32.totalorder %s102, %s104
      %p111 = scmp.eq.s32.totalorder %s31, 1
      %p112 = por %p110, %p111
      %p113 = scmp.ne.s32.totalorder %s104, %s105
      %p114 = scmp.eq.s32.totalorder %s31, 0
      %p115 = por %p113, %p114
      %p116 = scmp.ne.s32.totalorder %s104, %s105
      %p117 = scmp.eq.s32.totalorder %s32, 1
      %p118 = por %p116, %p117
      %p120 = scmp.ne.s32.totalorder %s105, %s119
      %p121 = scmp.eq.s32.totalorder %s32, 0
      %p122 = por %p120, %p121
      %s124 = sadd.s32 %s123, 1
      %p127 = scmp.eq.s32.totalorder %s26, 1
      %p128 = scmp.ne.s32.totalorder %s123, %s125
      %p129 = scmp.eq.s32.totalorder %s26, 0
      %p130 = por %p128, %p129
      %p131 = scmp.ne.s32.totalorder %s123, %s125
      %p132 = scmp.eq.s32.totalorder %s31, 1
      %p133 = por %p131, %p132
      %p134 = scmp.ne.s32.totalorder %s125, %s126
      %p135 = scmp.eq.s32.totalorder %s31, 0
      %p136 = por %p134, %p135
      %p137 = scmp.ne.s32.totalorder %s125, %s126
      %p138 = scmp.eq.s32.totalorder %s32, 1
      %p139 = por %p137, %p138
      %p141 = scmp.ne.s32.totalorder %s126, %s140
      %p142 = scmp.eq.s32.totalorder %s32, 0
      %p143 = por %p141, %p142
      %s145 = sadd.s32 %s144, 1
      %p148 = scmp.eq.s32.totalorder %s26, 1
      %p149 = scmp.ne.s32.totalorder %s144, %s146
      %p150 = scmp.eq.s32.totalorder %s26, 0
      %p151 = por %p149, %p150
      %p152 = scmp.ne.s32.totalorder %s144, %s146
      %p153 = scmp.eq.s32.totalorder %s31, 1
      %p154 = por %p152, %p153
      %p155 = scmp.ne.s32.totalorder %s146, %s147
      %p156 = scmp.eq.s32.totalorder %s31, 0
      %p157 = por %p155, %p156
      %p158 = scmp.ne.s32.totalorder %s146, %s147
      %p159 = scmp.eq.s32.totalorder %s32, 1
      %p160 = por %p158, %p159
      %p162 = scmp.ne.s32.totalorder %s147, %s161
      %p163 = scmp.eq.s32.totalorder %s32, 0
      %p164 = por %p162, %p163
      %s166 = sadd.s32 %s165, 1
      %p169 = scmp.eq.s32.totalorder %s26, 1
      %p170 = scmp.ne.s32.totalorder %s165, %s167
      %p171 = scmp.eq.s32.totalorder %s26, 0
      %p172 = por %p170, %p171
      %p173 = scmp.ne.s32.totalorder %s165, %s167
      %p174 = scmp.eq.s32.totalorder %s31, 1
      %p175 = por %p173, %p174
      %p176 = scmp.ne.s32.totalorder %s167, %s168
      %p177 = scmp.eq.s32.totalorder %s31, 0
      %p178 = por %p176, %p177
      %p179 = scmp.ne.s32.totalorder %s167, %s168
      %p180 = scmp.eq.s32.totalorder %s32, 1
      %p181 = por %p179, %p180
      %p183 = scmp.ne.s32.totalorder %s168, %s182
      %p184 = scmp.eq.s32.totalorder %s32, 0
      %p185 = por %p183, %p184
      %s187 = sadd.s32 %s186, 1
      %p190 = scmp.eq.s32.totalorder %s26, 1
      %p191 = scmp.ne.s32.totalorder %s186, %s188
      %p192 = scmp.eq.s32.totalorder %s26, 0
      %p193 = por %p191, %p192
      %p194 = scmp.ne.s32.totalorder %s186, %s188
      %p195 = scmp.eq.s32.totalorder %s31, 1
      %p196 = por %p194, %p195
      %p197 = scmp.ne.s32.totalorder %s188, %s189
      %p198 = scmp.eq.s32.totalorder %s31, 0
      %p199 = por %p197, %p198
      %p200 = scmp.ne.s32.totalorder %s188, %s189
      %p201 = scmp.eq.s32.totalorder %s32, 1
      %p202 = por %p200, %p201
      %p204 = scmp.ne.s32.totalorder %s189, %s203
      %p205 = scmp.eq.s32.totalorder %s32, 0
      %p206 = por %p204, %p205
      %s208 = sadd.s32 %s207, 1
      %p211 = scmp.eq.s32.totalorder %s26, 1
      %p212 = scmp.ne.s32.totalorder %s207, %s209
      %p213 = scmp.eq.s32.totalorder %s26, 0
      %p214 = por %p212, %p213
      %p215 = scmp.ne.s32.totalorder %s207, %s209
      %p216 = scmp.eq.s32.totalorder %s31, 1
      %p217 = por %p215, %p216
      %p218 = scmp.ne.s32.totalorder %s209, %s210
      %p219 = scmp.eq.s32.totalorder %s31, 0
      %p220 = por %p218, %p219
      %p221 = scmp.ne.s32.totalorder %s209, %s210
      %p222 = scmp.eq.s32.totalorder %s32, 1
      %p223 = por %p221, %p222
      %p225 = scmp.ne.s32.totalorder %s210, %s224
      %p226 = scmp.eq.s32.totalorder %s32, 0
      %p227 = por %p225, %p226
      %s229 = sadd.s32 %s228, 1
      %p232 = scmp.eq.s32.totalorder %s26, 1
      %p233 = scmp.ne.s32.totalorder %s228, %s230
      %p234 = scmp.eq.s32.totalorder %s26, 0
      %p235 = por %p233, %p234
      %p236 = scmp.ne.s32.totalorder %s228, %s230
      %p237 = scmp.eq.s32.totalorder %s31, 1
      %p238 = por %p236, %p237
      %p239 = scmp.ne.s32.totalorder %s230, %s231
      %p240 = scmp.eq.s32.totalorder %s31, 0
      %p241 = por %p239, %p240
      %p242 = scmp.ne.s32.totalorder %s230, %s231
      %p243 = scmp.eq.s32.totalorder %s32, 1
      %p244 = por %p242, %p243
      %p246 = scmp.ne.s32.totalorder %s231, %s245
      %p247 = scmp.eq.s32.totalorder %s32, 0
      %p248 = por %p246, %p247
      %s250 = sadd.s32 %s249, 1
      %p253 = scmp.eq.s32.totalorder %s26, 1
      %p254 = scmp.ne.s32.totalorder %s249, %s251
      %p255 = scmp.eq.s32.totalorder %s26, 0
      %p256 = por %p254, %p255
      %p257 = scmp.ne.s32.totalorder %s249, %s251
      %p258 = scmp.eq.s32.totalorder %s31, 1
      %p259 = por %p257, %p258
      %p260 = scmp.ne.s32.totalorder %s251, %s252
      %p261 = scmp.eq.s32.totalorder %s31, 0
      %p262 = por %p260, %p261
      %p263 = scmp.ne.s32.totalorder %s251, %s252
      %p264 = scmp.eq.s32.totalorder %s32, 1
      %p265 = por %p263, %p264
      %p267 = scmp.ne.s32.totalorder %s252, %s266
      %p268 = scmp.eq.s32.totalorder %s32, 0
      %p269 = por %p267, %p268
      %s270 = ssub.s32 %s26, %s33
      %p271 = scmp.eq.s32.totalorder %s270, 0
      %s273 = sadd.s32 %s272, 1
      %s274 = scalar_select %p271, %s272, %s273
      %p277 = pneg %p271
      %p278 = scmp.eq.s32.totalorder %s26, 1
      %p279 = por %p277, %p278
      %p280 = scmp.ne.s32.totalorder %s272, %s275
      %p281 = scmp.eq.s32.totalorder %s26, 0
      %p282 = por %p280, %p281
      %p283 = scmp.ne.s32.totalorder %s272, %s275
      %p284 = scmp.eq.s32.totalorder %s31, 1
      %p285 = por %p283, %p284
      %p286 = scmp.ne.s32.totalorder %s275, %s276
      %p287 = scmp.eq.s32.totalorder %s31, 0
      %p288 = por %p286, %p287
      %p289 = scmp.ne.s32.totalorder %s275, %s276
      %p290 = scmp.eq.s32.totalorder %s32, 1
      %p291 = por %p289, %p290
      %p293 = scmp.ne.s32.totalorder %s276, %s292
      %p294 = scmp.eq.s32.totalorder %s32, 0
      %p295 = por %p293, %p294
      %p296 = scmp.le.s32.totalorder 1, %s26
      %p297 = scmp.lt.s32.totalorder %s26, 3
      %p298 = pnand %p296, %p297
      %p299 = pneg %p298
      // Predicated region
      $region9: #{tpu_custom_call.1} parent=5 // pred_check
        _
      $region10: #{tpu_custom_call.1} parent=5 // pred_check_branch
        %301 = sbr.rel (%p298) target = $region12
      $region11: #{tpu_custom_call.1} parent=5 // pred_region
        %s302 = ssub.s32 %s26, 1
        // Predicated region
        $region13: #{tpu_custom_call.1} parent=11 // pred_check
          %p303 = pneg %p73
        $region14: #{tpu_custom_call.1} parent=11 // pred_check_branch
          %305 = sbr.rel (%p303) target = $region16
        $region15: #{tpu_custom_call.1} parent=11 // pred_region
          %s307 = ssub.s32 256, 256
          %308 = vsyncadd [#allocation6], %s307
          %s309 = sshll.u32 [#allocation5], 4
          %s310 = int_to_ptr.vmem [resolvable:$true] %s309
          %315 = dma.hbm_to_vmem [thread:$0]  %s1, 256, %s310, [#allocation6], 128, 128, 8
        $region16: #{tpu_custom_call.1} parent=11 // pred_fallthru
          _
        // Predicated region
        $region17: #{tpu_custom_call.1} parent=11 // pred_check
          %p316 = pneg %p94
        $region18: #{tpu_custom_call.1} parent=11 // pred_check_branch
          %318 = sbr.rel (%p316) target = $region20
        $region19: #{tpu_custom_call.1} parent=11 // pred_region
          %s320 = ssub.s32 256, 256
          %321 = vsyncadd [#allocation6], %s320
          %s322 = sshll.u32 [#allocation7], 4
          %s323 = int_to_ptr.vmem [resolvable:$true] %s322
          %328 = dma.hbm_to_vmem [thread:$0]  %s2, 256, %s323, [#allocation6], 128, 128, 8
        $region20: #{tpu_custom_call.1} parent=11 // pred_fallthru
          _
        // Predicated region
        $region21: #{tpu_custom_call.1} parent=11 // pred_check
          %p329 = pneg %p115
        $region22: #{tpu_custom_call.1} parent=11 // pred_check_branch
          %331 = sbr.rel (%p329) target = $region24
        $region23: #{tpu_custom_call.1} parent=11 // pred_region
          %s333 = ssub.s32 256, 256
          %334 = vsyncadd [#allocation9], %s333
          %s335 = sshll.u32 [#allocation8], 4
          %s336 = int_to_ptr.vmem [resolvable:$true] %s335
          %341 = dma.hbm_to_vmem [thread:$0]  %s3, 256, %s336, [#allocation9], 128, 128, 8
        $region24: #{tpu_custom_call.1} parent=11 // pred_fallthru
          _
        // Predicated region
        $region25: #{tpu_custom_call.1} parent=11 // pred_check
          %p342 = pneg %p136
        $region26: #{tpu_custom_call.1} parent=11 // pred_check_branch
          %344 = sbr.rel (%p342) target = $region28
        $region27: #{tpu_custom_call.1} parent=11 // pred_region
          _
        $region28: #{tpu_custom_call.1} parent=11 // pred_fallthru
          _
        // Predicated region
        $region29: #{tpu_custom_call.1} parent=11 // pred_check
          %p345 = pneg %p157
        $region30: #{tpu_custom_call.1} parent=11 // pred_check_branch
          %347 = sbr.rel (%p345) target = $region32
        $region31: #{tpu_custom_call.1} parent=11 // pred_region
          _
        $region32: #{tpu_custom_call.1} parent=11 // pred_fallthru
          _
        // Predicated region
        $region33: #{tpu_custom_call.1} parent=11 // pred_check
          %p348 = pneg %p178
        $region34: #{tpu_custom_call.1} parent=11 // pred_check_branch
          %350 = sbr.rel (%p348) target = $region36
        $region35: #{tpu_custom_call.1} parent=11 // pred_region
          _
        $region36: #{tpu_custom_call.1} parent=11 // pred_fallthru
          _
        // Predicated region
        $region37: #{tpu_custom_call.1} parent=11 // pred_check
          %p351 = pneg %p199
        $region38: #{tpu_custom_call.1} parent=11 // pred_check_branch
          %353 = sbr.rel (%p351) target = $region40
        $region39: #{tpu_custom_call.1} parent=11 // pred_region
          %s355 = ssub.s32 512, 512
          %356 = vsyncadd [#allocation9], %s355
          %s357 = sshll.u32 [#allocation10], 4
          %s358 = int_to_ptr.vmem [resolvable:$true] %s357
          %363 = dma.hbm_to_vmem [thread:$0]  %s7, 512, %s358, [#allocation9], 128, 128, 8
        $region40: #{tpu_custom_call.1} parent=11 // pred_fallthru
          _
        // Predicated region
        $region41: #{tpu_custom_call.1} parent=11 // pred_check
          %p364 = pneg %p220
        $region42: #{tpu_custom_call.1} parent=11 // pred_check_branch
          %366 = sbr.rel (%p364) target = $region44
        $region43: #{tpu_custom_call.1} parent=11 // pred_region
          _
        $region44: #{tpu_custom_call.1} parent=11 // pred_fallthru
          _
        // Predicated region
        $region45: #{tpu_custom_call.1} parent=11 // pred_check
          %p367 = pneg %p241
        $region46: #{tpu_custom_call.1} parent=11 // pred_check_branch
          %369 = sbr.rel (%p367) target = $region48
        $region47: #{tpu_custom_call.1} parent=11 // pred_region
          %s371 = ssub.s32 512, 512
          %372 = vsyncadd [#allocation12], %s371
          %s373 = sshll.u32 [#allocation11], 4
          %s374 = int_to_ptr.vmem [resolvable:$true] %s373
          %379 = dma.hbm_to_vmem [thread:$0]  %s9, 512, %s374, [#allocation12], 128, 128, 8
        $region48: #{tpu_custom_call.1} parent=11 // pred_fallthru
          _
        // Predicated region
        $region49: #{tpu_custom_call.1} parent=11 // pred_check
          %p380 = pneg %p262
        $region50: #{tpu_custom_call.1} parent=11 // pred_check_branch
          %382 = sbr.rel (%p380) target = $region52
        $region51: #{tpu_custom_call.1} parent=11 // pred_region
          _
        $region52: #{tpu_custom_call.1} parent=11 // pred_fallthru
          _
      $region12: #{tpu_custom_call.1} parent=5 // pred_fallthru
        _
      %p383 = scmp.lt.s32.totalorder %s26, 2
      // Predicated region
      $region53: #{tpu_custom_call.1} parent=5 // pred_check
        %p384 = pneg %p383
      $region54: #{tpu_custom_call.1} parent=5 // pred_check_branch
        %386 = sbr.rel (%p384) target = $region56
      $region55: #{tpu_custom_call.1} parent=5 // pred_region
        // Predicated region
        $region57: #{tpu_custom_call.1} parent=55 // pred_check
          %p387 = pneg %p46
        $region58: #{tpu_custom_call.1} parent=55 // pred_check_branch
          %389 = sbr.rel (%p387) target = $region60
        $region59: #{tpu_custom_call.1} parent=55 // pred_region
          %s390 = sand.u32 %s36, 1
          %s391 = scalar_lea.sflag [#allocation3], %s390
          %s392 = sand.u32 %s36, 1
          %s393 = smul.addr %s392, 16
          %s394 = scalar_lea.vmem [#allocation2], %s393
          %s396 = ssub.s32 256, 256
          %397 = vsyncadd %s391, %s396
          %s398 = smul.addr %s26, 2
          %s399 = smul.addr %s398, 128
          %s400 = scalar_lea.hbm %s0, %s399
          %s401 = sshll.u32 %s394, 4
          %s402 = int_to_ptr.vmem [resolvable:$true] %s401
          %407 = dma.hbm_to_vmem [thread:$0]  %s400, 256, %s402, %s391, 128, 128, 8
        $region60: #{tpu_custom_call.1} parent=55 // pred_fallthru
          _
      $region56: #{tpu_custom_call.1} parent=5 // pred_fallthru
        _
      %p408 = scmp.le.s32.totalorder 1, %s26
      %p409 = scmp.lt.s32.totalorder %s26, 3
      %p410 = pnand %p408, %p409
      %p411 = pneg %p410
      // Predicated region
      $region61: #{tpu_custom_call.1} parent=5 // pred_check
        _
      $region62: #{tpu_custom_call.1} parent=5 // pred_check_branch
        %413 = sbr.rel (%p410) target = $region64
      $region63: #{tpu_custom_call.1} parent=5 // pred_region
        %s414 = ssub.s32 %s26, 1
        %s415 = sand.u32 %s39, 1
        %s416 = scalar_lea.sflag [#allocation3], %s415
        %s417 = sand.u32 %s39, 1
        %s418 = smul.addr %s417, 16
        %s419 = scalar_lea.vmem [#allocation2], %s418
        // Predicated region
        $region65: #{tpu_custom_call.1} parent=63 // pred_check
          %p420 = pneg %p52
        $region66: #{tpu_custom_call.1} parent=63 // pred_check_branch
          %422 = sbr.rel (%p420) target = $region68
        $region67: #{tpu_custom_call.1} parent=63 // pred_region
          %423 = dma.done %s416, 256
        $region68: #{tpu_custom_call.1} parent=63 // pred_fallthru
          _
        // Predicated region
        $region69: #{tpu_custom_call.1} parent=63 // pred_check
          %p424 = pneg %p73
        $region70: #{tpu_custom_call.1} parent=63 // pred_check_branch
          %426 = sbr.rel (%p424) target = $region72
        $region71: #{tpu_custom_call.1} parent=63 // pred_region
          %427 = dma.done [#allocation6], 256
        $region72: #{tpu_custom_call.1} parent=63 // pred_fallthru
          _
        // Predicated region
        $region73: #{tpu_custom_call.1} parent=63 // pred_check
          %p428 = pneg %p94
        $region74: #{tpu_custom_call.1} parent=63 // pred_check_branch
          %430 = sbr.rel (%p428) target = $region76
        $region75: #{tpu_custom_call.1} parent=63 // pred_region
          %431 = dma.done [#allocation6], 256
        $region76: #{tpu_custom_call.1} parent=63 // pred_fallthru
          _
        // Predicated region
        $region77: #{tpu_custom_call.1} parent=63 // pred_check
          %p432 = pneg %p115
        $region78: #{tpu_custom_call.1} parent=63 // pred_check_branch
          %434 = sbr.rel (%p432) target = $region80
        $region79: #{tpu_custom_call.1} parent=63 // pred_region
          %435 = dma.done [#allocation9], 256
        $region80: #{tpu_custom_call.1} parent=63 // pred_fallthru
          _
        // Predicated region
        $region81: #{tpu_custom_call.1} parent=63 // pred_check
          %p436 = pneg %p199
        $region82: #{tpu_custom_call.1} parent=63 // pred_check_branch
          %438 = sbr.rel (%p436) target = $region84
        $region83: #{tpu_custom_call.1} parent=63 // pred_region
          %439 = dma.done [#allocation9], 512
        $region84: #{tpu_custom_call.1} parent=63 // pred_fallthru
          _
        // Predicated region
        $region85: #{tpu_custom_call.1} parent=63 // pred_check
          %p440 = pneg %p241
        $region86: #{tpu_custom_call.1} parent=63 // pred_check_branch
          %442 = sbr.rel (%p440) target = $region88
        $region87: #{tpu_custom_call.1} parent=63 // pred_region
          %443 = dma.done [#allocation12], 512
        $region88: #{tpu_custom_call.1} parent=63 // pred_fallthru
          _
        %s444 = sand.u32 %s39, 1
        %s445 = scalar_lea.sflag [#allocation3], %s444
        %s446 = sand.u32 %s39, 1
        %s447 = smul.addr %s446, 16
        %s448 = scalar_lea.vmem [#allocation2], %s447
        %p449 = pneg %p52
        %p450 = pneg %p49
        %p451 = pneg %p73
        %p452 = pneg %p70
        %p453 = pneg %p94
        %p454 = pneg %p91
        %p455 = pneg %p115
        %p456 = pneg %p112
        %p457 = pneg %p136
        %p458 = pneg %p133
        %p459 = pneg %p157
        %p460 = pneg %p154
        %p461 = pneg %p178
        %p462 = pneg %p175
        %p463 = pneg %p199
        %p464 = pneg %p196
        %p465 = pneg %p220
        %p466 = pneg %p217
        %p467 = pneg %p241
        %p468 = pneg %p238
        %p469 = pneg %p262
        %p470 = pneg %p259
        %p471 = pneg %p288
        %p472 = pneg %p285
        %s473 = sand.u32 %s275, 1
        %s474 = scalar_lea.sflag [#allocation4], %s473
        %s475 = sand.u32 %s275, 1
        %s476 = smul.addr %s475, 16
        %s477 = scalar_lea.vmem [#allocation13], %s476
        %v478 = vld [vmem:[%s419] sm:$0xff]
        %v479 = vld [vmem:[%s419 + $0x8] sm:$0xff]
        %v480 = vld [vmem:[#allocation5] sm:$0xff]
        %v481 = vld [vmem:[#allocation5 + $0x8] sm:$0xff]
        %v482 = vmul.f32 %v478, %v478
        %v483 = vmul.f32 %v479, %v479
        %vm484 = vcmask 261120
        %v485 = vsel %vm484, %v482, 0.0
        %v486 = vsel %vm484, %v483, 0.0
        %v487 = vadd.f32 %v485, %v486
        %488 = vadd.xlane.f32.xlu0 %v487
        %v489 = vpop.xlane.xlu0 %488
        %v490 = vrot.slane %v489, 4
        %v491 = vadd.f32 %v489, %v490
        %v492 = vrot.slane %v491, 2
        %v493 = vadd.f32 %v491, %v492
        %v494 = vrot.slane %v493, 1
        %v495 = vadd.f32 %v493, %v494
        %s496 = vtos %v495
        %v497 = vstv %s496
        %v498 = vrsqrt.pop %v497
        %v499 = vmul.f32 %v497, %v498
        %vm500 = vcmp.eq.f32.partialorder %v497, inf
        %v501 = vsel %vm500, %v497, %v499
        %vm502 = vcmp.eq.f32.partialorder %v497, 0.0
        %v503 = vand.u32 %v497, 2147483648
        %v504 = vsel %vm502, %v503, %v501
        %s505 = vtos %v504
        %s506 = smul.f32 %s505, 0.044194173
        %v507 = vstv %s506
        %v508 = vrcp.pop %v507
        %v509 = vmul.f32 %v478, %v508
        %v510 = vmul.f32 %v479, %v508
        %v511 = vmul.f32 %v480, %v509
        %v512 = vmul.f32 %v481, %v510
        %v513 = vld [vmem:[%s4] sm:$0xff]
        %v514 = vld [vmem:[%s4 + $0x8] sm:$0xff]
        %v515 = vld [vmem:[%s4 + $0x10] sm:$0xff]
        %v516 = vld [vmem:[%s4 + $0x18] sm:$0xff]
        %v517 = vld [vmem:[%s4 + $0x20] sm:$0xff]
        %v518 = vld [vmem:[%s4 + $0x28] sm:$0xff]
        %v519 = vld [vmem:[%s4 + $0x30] sm:$0xff]
        %v520 = vld [vmem:[%s4 + $0x38] sm:$0xff]
        %v521 = vld [vmem:[%s4 + $0x40] sm:$0xff]
        %v522 = vld [vmem:[%s4 + $0x48] sm:$0xff]
        %v523 = vld [vmem:[%s4 + $0x50] sm:$0xff]
        %v524 = vld [vmem:[%s4 + $0x58] sm:$0xff]
        %v526 = vsel %vm484, %v511, 0
        %v529 = vsel %vm484, %v512, 0
        %531 = vmatprep.subr.mxu0 0.0
        %532 = vmatpush1.msra.mxu0 0.0
        %533 = vmatprep.subr.mxu0 0.0
        %534 = vmatpush1.msra.mxu0 0.0
        %535 = vmatprep.subr.mxu0 0.0
        %536 = vmatpush1.msra.mxu0 0.0
        %537 = vmatprep.subr.mxu0 0.0
        %538 = vmatpush1.msra.mxu0 0.0
        %539 = vmatprep.subr.mxu0 0.0
        %540 = vmatpush1.msra.mxu0 0.0
        %541 = vmatprep.subr.mxu0 0.0
        %542 = vmatpush1.msra.mxu0 0.0
        %543 = vmatprep.subr.mxu0 0.0
        %544 = vmatpush1.msra.mxu0 0.0
        %545 = vmatprep.subr.mxu0 0.0
        %546 = vmatpush1.msra.mxu0 0.0
        %547 = vmatprep.subr.mxu0 0.0
        %548 = vmatpush1.msra.mxu0 0.0
        %549 = vmatprep.subr.mxu0 0.0
        %550 = vmatpush1.msra.mxu0 0.0
        %551 = vmatprep.subr.mxu0 0.0
        %552 = vmatpush1.msra.mxu0 0.0
        %553 = vmatprep.subr.mxu0 0.0
        %554 = vmatpush1.msra.mxu0 0.0
        %555 = vmatprep.subr.mxu0 %v523
        %556 = vmatpush1.msra.mxu0 %v522
        %557 = vmatprep.subr.mxu0 %v520
        %558 = vmatpush1.msra.mxu0 %v519
        %559 = vmatprep.subr.mxu0 %v517
        %560 = vmatpush1.msra.mxu0 %v516
        %561 = vmatprep.subr.mxu0 %v514
        %562 = vmatpush1.msra.mxu0 %v513
        %563 = vmatprep.subr.mxu0 0.0
        %564 = vmatpush2.msra.mxu0 0.0
        %565 = vmatprep.subr.mxu0 0.0
        %566 = vmatpush2.msra.mxu0 0.0
        %567 = vmatprep.subr.mxu0 0.0
        %568 = vmatpush2.msra.mxu0 0.0
        %569 = vmatprep.subr.mxu0 0.0
        %570 = vmatpush2.msra.mxu0 0.0
        %571 = vmatprep.subr.mxu0 0.0
        %572 = vmatpush2.msra.mxu0 0.0
        %573 = vmatprep.subr.mxu0 0.0
        %574 = vmatpush2.msra.mxu0 0.0
        %575 = vmatprep.subr.mxu0 0.0
        %576 = vmatpush2.msra.mxu0 0.0
        %577 = vmatprep.subr.mxu0 0.0
        %578 = vmatpush2.msra.mxu0 0.0
        %579 = vmatprep.subr.mxu0 0.0
        %580 = vmatpush2.msra.mxu0 0.0
        %581 = vmatprep.subr.mxu0 0.0
        %582 = vmatpush2.msra.mxu0 0.0
        %583 = vmatprep.subr.mxu0 0.0
        %584 = vmatpush2.msra.mxu0 0.0
        %585 = vmatprep.subr.mxu0 0.0
        %586 = vmatpush2.msra.mxu0 0.0
        %587 = vmatprep.subr.mxu0 0.0
        %588 = vmatpush2.msra.mxu0 0.0
        %589 = vmatprep.subr.mxu0 0.0
        %590 = vmatpush2.msra.mxu0 0.0
        %591 = vmatprep.subr.mxu0 0.0
        %592 = vmatpush2.msra.mxu0 0.0
        %593 = vmatprep.subr.mxu0 0.0
        %594 = vmatpush2.msra.mxu0 0.0
        %595 = vmatprep.mubr.f32.mxu0 0.0
        %596 = vmatmul.mubr.f32.gmra.mxu0 %v526
        %v597 = vpop.f32.mrf.mxu0
        %v598 = vadd.f32 0.0, %v597
        %v599 = vpop.f32.mrf.mxu0
        %v600 = vadd.f32 0.0, %v599
        %601 = vmatprep.mubr.f32.mxu0 0.0
        %602 = vmatmul.mubr.f32.gmra.mxu0 %v529
        %v603 = vpop.f32.mrf.mxu0
        %v604 = vadd.f32 0.0, %v603
        %v605 = vpop.f32.mrf.mxu0
        %v606 = vadd.f32 0.0, %v605
        %607 = vdwg.mxu0
        %608 = vmatprep.subr.mxu0 0.0
        %609 = vmatpush1.msra.mxu0 0.0
        %610 = vmatprep.subr.mxu0 0.0
        %611 = vmatpush1.msra.mxu0 0.0
        %612 = vmatprep.subr.mxu0 0.0
        %613 = vmatpush1.msra.mxu0 0.0
        %614 = vmatprep.subr.mxu0 0.0
        %615 = vmatpush1.msra.mxu0 0.0
        %616 = vmatprep.subr.mxu0 0.0
        %617 = vmatpush1.msra.mxu0 0.0
        %618 = vmatprep.subr.mxu0 0.0
        %619 = vmatpush1.msra.mxu0 0.0
        %620 = vmatprep.subr.mxu0 0.0
        %621 = vmatpush1.msra.mxu0 0.0
        %622 = vmatprep.subr.mxu0 0.0
        %623 = vmatpush1.msra.mxu0 0.0
        %624 = vmatprep.subr.mxu0 0.0
        %625 = vmatpush1.msra.mxu0 0.0
        %626 = vmatprep.subr.mxu0 0.0
        %627 = vmatpush1.msra.mxu0 0.0
        %628 = vmatprep.subr.mxu0 0.0
        %629 = vmatpush1.msra.mxu0 0.0
        %630 = vmatprep.subr.mxu0 0.0
        %631 = vmatpush1.msra.mxu0 0.0
        %632 = vmatprep.subr.mxu0 0.0
        %633 = vmatpush1.msra.mxu0 %v524
        %634 = vmatprep.subr.mxu0 0.0
        %635 = vmatpush1.msra.mxu0 %v521
        %636 = vmatprep.subr.mxu0 0.0
        %637 = vmatpush1.msra.mxu0 %v518
        %638 = vmatprep.subr.mxu0 0.0
        %639 = vmatpush1.msra.mxu0 %v515
        %640 = vmatprep.subr.mxu0 0.0
        %641 = vmatpush2.msra.mxu0 0.0
        %642 = vmatprep.subr.mxu0 0.0
        %643 = vmatpush2.msra.mxu0 0.0
        %644 = vmatprep.subr.mxu0 0.0
        %645 = vmatpush2.msra.mxu0 0.0
        %646 = vmatprep.subr.mxu0 0.0
        %647 = vmatpush2.msra.mxu0 0.0
        %648 = vmatprep.subr.mxu0 0.0
        %649 = vmatpush2.msra.mxu0 0.0
        %650 = vmatprep.subr.mxu0 0.0
        %651 = vmatpush2.msra.mxu0 0.0
        %652 = vmatprep.subr.mxu0 0.0
        %653 = vmatpush2.msra.mxu0 0.0
        %654 = vmatprep.subr.mxu0 0.0
        %655 = vmatpush2.msra.mxu0 0.0
        %656 = vmatprep.subr.mxu0 0.0
        %657 = vmatpush2.msra.mxu0 0.0
        %658 = vmatprep.subr.mxu0 0.0
        %659 = vmatpush2.msra.mxu0 0.0
        %660 = vmatprep.subr.mxu0 0.0
        %661 = vmatpush2.msra.mxu0 0.0
        %662 = vmatprep.subr.mxu0 0.0
        %663 = vmatpush2.msra.mxu0 0.0
        %664 = vmatprep.subr.mxu0 0.0
        %665 = vmatpush2.msra.mxu0 0.0
        %666 = vmatprep.subr.mxu0 0.0
        %667 = vmatpush2.msra.mxu0 0.0
        %668 = vmatprep.subr.mxu0 0.0
        %669 = vmatpush2.msra.mxu0 0.0
        %670 = vmatprep.subr.mxu0 0.0
        %671 = vmatpush2.msra.mxu0 0.0
        %672 = vmatprep.mubr.f32.mxu0 0.0
        %673 = vmatmul.mubr.f32.gmra.mxu0 %v526
        %v674 = vpop.f32.mrf.mxu0
        %v675 = vadd.f32 0.0, %v674
        %v676 = vpop.f32.mrf.mxu0
        %677 = vmatprep.mubr.f32.mxu0 0.0
        %678 = vmatmul.mubr.f32.gmra.mxu0 %v529
        %v679 = vpop.f32.mrf.mxu0
        %v680 = vadd.f32 0.0, %v679
        %v681 = vpop.f32.mrf.mxu0
        %682 = vdwg.mxu0
        %v683 = vld [vmem:[#allocation7] sm:$0xff]
        %v684 = vld [vmem:[#allocation7 + $0x8] sm:$0xff]
        %v685 = vmul.f32 %v598, %v683
        %v686 = vmul.f32 %v604, %v684
        %v687 = vld [vmem:[#allocation8] sm:$0xff]
        %v688 = vld [vmem:[#allocation8 + $0x8] sm:$0xff]
        %v689 = vmul.f32 %v600, %v687
        %v690 = vmul.f32 %v606, %v688
        %v691 = vadd.f32 %v685, %v689
        %v692 = vadd.f32 %v686, %v690
        %v693 = vlaneseq
        %v694 = vshrl.u32 %v693, 7
        %v695 = vadd.s32 %v694, 8
        %v696 = vlaneseq
        %v697 = vand.u32 %v696, 127
        %vm698 = vcmp.le.s32.totalorder %v697, %v694
        %vm699 = vcmp.le.s32.totalorder %v697, %v695
        %v700 = vmul.f32 %v691, 0.17677669
        %v701 = vmul.f32 %v692, 0.17677669
        %704 = vrot.lane.b32.xlu0 %v691, 64
        %v705 = vpop.permute.xlu0 %704
        %706 = vrot.lane.b32.xlu0 %v692, 64
        %v707 = vpop.permute.xlu0 %706
        %v709 = vsel %vm484, %v700, 0
        %v712 = vsel %vm484, %v701, 0
        %v714 = vsel %vm484, %v705, 0
        %v716 = vsel %vm484, %v707, 0
        %718 = vmatprep.subr.mxu0 0.0
        %719 = vmatpush1.xpose.msra.mxu0 0.0
        %720 = vmatprep.subr.mxu0 0.0
        %721 = vmatpush1.xpose.msra.mxu0 0.0
        %722 = vmatprep.subr.mxu0 0.0
        %723 = vmatpush1.xpose.msra.mxu0 0.0
        %724 = vmatprep.subr.mxu0 0.0
        %725 = vmatpush1.xpose.msra.mxu0 0.0
        %726 = vmatprep.subr.mxu0 0.0
        %727 = vmatpush1.xpose.msra.mxu0 0.0
        %728 = vmatprep.subr.mxu0 0.0
        %729 = vmatpush1.xpose.msra.mxu0 0.0
        %730 = vmatprep.subr.mxu0 0.0
        %731 = vmatpush1.xpose.msra.mxu0 0.0
        %732 = vmatprep.subr.mxu0 0.0
        %733 = vmatpush1.xpose.msra.mxu0 0.0
        %734 = vmatprep.subr.mxu0 0.0
        %735 = vmatpush1.xpose.msra.mxu0 0.0
        %736 = vmatprep.subr.mxu0 0.0
        %737 = vmatpush1.xpose.msra.mxu0 0.0
        %738 = vmatprep.subr.mxu0 0.0
        %739 = vmatpush1.xpose.msra.mxu0 0.0
        %740 = vmatprep.subr.mxu0 0.0
        %741 = vmatpush1.xpose.msra.mxu0 0.0
        %742 = vmatprep.subr.mxu0 0.0
        %743 = vmatpush1.xpose.msra.mxu0 0.0
        %744 = vmatprep.subr.mxu0 0.0
        %745 = vmatpush1.xpose.msra.mxu0 0.0
        %746 = vmatprep.subr.mxu0 0.0
        %747 = vmatpush1.xpose.msra.mxu0 %v716
        %748 = vmatprep.subr.mxu0 0.0
        %749 = vmatpush1.xpose.msra.mxu0 %v714
        %750 = vmatprep.subr.mxu0 0.0
        %751 = vmatpush2.xpose.msra.mxu0 0.0
        %752 = vmatprep.subr.mxu0 0.0
        %753 = vmatpush2.xpose.msra.mxu0 0.0
        %754 = vmatprep.subr.mxu0 0.0
        %755 = vmatpush2.xpose.msra.mxu0 0.0
        %756 = vmatprep.subr.mxu0 0.0
        %757 = vmatpush2.xpose.msra.mxu0 0.0
        %758 = vmatprep.subr.mxu0 0.0
        %759 = vmatpush2.xpose.msra.mxu0 0.0
        %760 = vmatprep.subr.mxu0 0.0
        %761 = vmatpush2.xpose.msra.mxu0 0.0
        %762 = vmatprep.subr.mxu0 0.0
        %763 = vmatpush2.xpose.msra.mxu0 0.0
        %764 = vmatprep.subr.mxu0 0.0
        %765 = vmatpush2.xpose.msra.mxu0 0.0
        %766 = vmatprep.subr.mxu0 0.0
        %767 = vmatpush2.xpose.msra.mxu0 0.0
        %768 = vmatprep.subr.mxu0 0.0
        %769 = vmatpush2.xpose.msra.mxu0 0.0
        %770 = vmatprep.subr.mxu0 0.0
        %771 = vmatpush2.xpose.msra.mxu0 0.0
        %772 = vmatprep.subr.mxu0 0.0
        %773 = vmatpush2.xpose.msra.mxu0 0.0
        %774 = vmatprep.subr.mxu0 0.0
        %775 = vmatpush2.xpose.msra.mxu0 0.0
        %776 = vmatprep.subr.mxu0 0.0
        %777 = vmatpush2.xpose.msra.mxu0 0.0
        %778 = vmatprep.subr.mxu0 0.0
        %779 = vmatpush2.xpose.msra.mxu0 0.0
        %780 = vmatprep.subr.mxu0 0.0
        %781 = vmatpush2.xpose.msra.mxu0 0.0
        %782 = vmatprep.mubr.f32.mxu0 0.0
        %783 = vmatmul.mubr.f32.gmra.mxu0 %v709
        %v784 = vpop.f32.mrf.mxu0
        %v785 = vadd.f32 0.0, %v784
        %v786 = vpop.f32.mrf.mxu0
        %787 = vmatprep.mubr.f32.mxu0 0.0
        %788 = vmatmul.mubr.f32.gmra.mxu0 %v712
        %v789 = vpop.f32.mrf.mxu0
        %v790 = vadd.f32 0.0, %v789
        %v791 = vpop.f32.mrf.mxu0
        %792 = vdwg.mxu0
        %v793 = vsel %vm698, %v785, -1e+30
        %v794 = vsel %vm699, %v790, -1e+30
        %vm795 = vcmask 130048
        %v796 = vsel %vm795, %v793, -inf
        %797 = vmax.xlane.f32.xlu0 %v796
        %v798 = vpop.xlane.xlu0 %797
        %v799 = vsel %vm795, %v794, -inf
        %800 = vmax.xlane.f32.xlu0 %v799
        %v801 = vpop.xlane.xlu0 %800
        %v802 = vsub.f32 %v793, %v798
        %v803 = vsub.f32 %v794, %v801
        %v804 = vmul.f32 %v802, 1.442695
        %v805 = vpow.pop %v804
        %v806 = vmul.f32 %v803, 1.442695
        %v807 = vpow.pop %v806
        %v808 = vsel %vm795, %v805, 0.0
        %809 = vadd.xlane.f32.xlu0 %v808
        %v810 = vpop.xlane.xlu0 %809
        %v811 = vsel %vm795, %v807, 0.0
        %812 = vadd.xlane.f32.xlu0 %v811
        %v813 = vpop.xlane.xlu0 %812
        %v814 = vrcp.pop %v810
        %v815 = vrcp.pop %v813
        %v816 = vmul.f32 %v805, %v814
        %v817 = vmul.f32 %v807, %v815
        %v819 = vsel %vm795, %v816, 0
        %v822 = vsel %vm795, %v817, 0
        %824 = vmatprep.subr.mxu0 0.0
        %825 = vmatpush1.msra.mxu0 0.0
        %826 = vmatprep.subr.mxu0 0.0
        %827 = vmatpush1.msra.mxu0 0.0
        %828 = vmatprep.subr.mxu0 0.0
        %829 = vmatpush1.msra.mxu0 0.0
        %830 = vmatprep.subr.mxu0 0.0
        %831 = vmatpush1.msra.mxu0 0.0
        %832 = vmatprep.subr.mxu0 0.0
        %833 = vmatpush1.msra.mxu0 0.0
        %834 = vmatprep.subr.mxu0 0.0
        %835 = vmatpush1.msra.mxu0 0.0
        %836 = vmatprep.subr.mxu0 0.0
        %837 = vmatpush1.msra.mxu0 0.0
        %838 = vmatprep.subr.mxu0 0.0
        %839 = vmatpush1.msra.mxu0 0.0
        %840 = vmatprep.subr.mxu0 0.0
        %841 = vmatpush1.msra.mxu0 0.0
        %842 = vmatprep.subr.mxu0 0.0
        %843 = vmatpush1.msra.mxu0 0.0
        %844 = vmatprep.subr.mxu0 0.0
        %845 = vmatpush1.msra.mxu0 0.0
        %846 = vmatprep.subr.mxu0 0.0
        %847 = vmatpush1.msra.mxu0 0.0
        %848 = vmatprep.subr.mxu0 0.0
        %849 = vmatpush1.msra.mxu0 0.0
        %850 = vmatprep.subr.mxu0 0.0
        %851 = vmatpush1.msra.mxu0 0.0
        %852 = vmatprep.subr.mxu0 0.0
        %853 = vmatpush1.msra.mxu0 %v680
        %854 = vmatprep.subr.mxu0 0.0
        %855 = vmatpush1.msra.mxu0 %v675
        %856 = vmatprep.subr.mxu0 0.0
        %857 = vmatpush2.msra.mxu0 0.0
        %858 = vmatprep.subr.mxu0 0.0
        %859 = vmatpush2.msra.mxu0 0.0
        %860 = vmatprep.subr.mxu0 0.0
        %861 = vmatpush2.msra.mxu0 0.0
        %862 = vmatprep.subr.mxu0 0.0
        %863 = vmatpush2.msra.mxu0 0.0
        %864 = vmatprep.subr.mxu0 0.0
        %865 = vmatpush2.msra.mxu0 0.0
        %866 = vmatprep.subr.mxu0 0.0
        %867 = vmatpush2.msra.mxu0 0.0
        %868 = vmatprep.subr.mxu0 0.0
        %869 = vmatpush2.msra.mxu0 0.0
        %870 = vmatprep.subr.mxu0 0.0
        %871 = vmatpush2.msra.mxu0 0.0
        %872 = vmatprep.subr.mxu0 0.0
        %873 = vmatpush2.msra.mxu0 0.0
        %874 = vmatprep.subr.mxu0 0.0
        %875 = vmatpush2.msra.mxu0 0.0
        %876 = vmatprep.subr.mxu0 0.0
        %877 = vmatpush2.msra.mxu0 0.0
        %878 = vmatprep.subr.mxu0 0.0
        %879 = vmatpush2.msra.mxu0 0.0
        %880 = vmatprep.subr.mxu0 0.0
        %881 = vmatpush2.msra.mxu0 0.0
        %882 = vmatprep.subr.mxu0 0.0
        %883 = vmatpush2.msra.mxu0 0.0
        %884 = vmatprep.subr.mxu0 0.0
        %885 = vmatpush2.msra.mxu0 0.0
        %886 = vmatprep.subr.mxu0 0.0
        %887 = vmatpush2.msra.mxu0 0.0
        %888 = vmatprep.mubr.f32.mxu0 0.0
        %889 = vmatmul.mubr.f32.gmra.mxu0 %v819
        %v890 = vpop.f32.mrf.mxu0
        %v891 = vadd.f32 0.0, %v890
        %v892 = vpop.f32.mrf.mxu0
        %893 = vmatprep.mubr.f32.mxu0 0.0
        %894 = vmatmul.mubr.f32.gmra.mxu0 %v822
        %v895 = vpop.f32.mrf.mxu0
        %v896 = vadd.f32 0.0, %v895
        %v897 = vpop.f32.mrf.mxu0
        %898 = vdwg.mxu0
        %899 = vrot.lane.b32.xlu0 %v700, 96
        %v900 = vpop.permute.xlu0 %899
        %901 = vrot.lane.b32.xlu0 %v701, 96
        %v902 = vpop.permute.xlu0 %901
        %903 = vrot.lane.b32.xlu0 %v691, 32
        %v904 = vpop.permute.xlu0 %903
        %905 = vrot.lane.b32.xlu0 %v692, 32
        %v906 = vpop.permute.xlu0 %905
        %v907 = vsel %vm484, %v900, 0
        %v909 = vsel %vm484, %v902, 0
        %v911 = vsel %vm484, %v904, 0
        %v913 = vsel %vm484, %v906, 0
        %915 = vmatprep.subr.mxu0 0.0
        %916 = vmatpush1.xpose.msra.mxu0 0.0
        %917 = vmatprep.subr.mxu0 0.0
        %918 = vmatpush1.xpose.msra.mxu0 0.0
        %919 = vmatprep.subr.mxu0 0.0
        %920 = vmatpush1.xpose.msra.mxu0 0.0
        %921 = vmatprep.subr.mxu0 0.0
        %922 = vmatpush1.xpose.msra.mxu0 0.0
        %923 = vmatprep.subr.mxu0 0.0
        %924 = vmatpush1.xpose.msra.mxu0 0.0
        %925 = vmatprep.subr.mxu0 0.0
        %926 = vmatpush1.xpose.msra.mxu0 0.0
        %927 = vmatprep.subr.mxu0 0.0
        %928 = vmatpush1.xpose.msra.mxu0 0.0
        %929 = vmatprep.subr.mxu0 0.0
        %930 = vmatpush1.xpose.msra.mxu0 0.0
        %931 = vmatprep.subr.mxu0 0.0
        %932 = vmatpush1.xpose.msra.mxu0 0.0
        %933 = vmatprep.subr.mxu0 0.0
        %934 = vmatpush1.xpose.msra.mxu0 0.0
        %935 = vmatprep.subr.mxu0 0.0
        %936 = vmatpush1.xpose.msra.mxu0 0.0
        %937 = vmatprep.subr.mxu0 0.0
        %938 = vmatpush1.xpose.msra.mxu0 0.0
        %939 = vmatprep.subr.mxu0 0.0
        %940 = vmatpush1.xpose.msra.mxu0 0.0
        %941 = vmatprep.subr.mxu0 0.0
        %942 = vmatpush1.xpose.msra.mxu0 0.0
        %943 = vmatprep.subr.mxu0 0.0
        %944 = vmatpush1.xpose.msra.mxu0 %v913
        %945 = vmatprep.subr.mxu0 0.0
        %946 = vmatpush1.xpose.msra.mxu0 %v911
        %947 = vmatprep.subr.mxu0 0.0
        %948 = vmatpush2.xpose.msra.mxu0 0.0
        %949 = vmatprep.subr.mxu0 0.0
        %950 = vmatpush2.xpose.msra.mxu0 0.0
        %951 = vmatprep.subr.mxu0 0.0
        %952 = vmatpush2.xpose.msra.mxu0 0.0
        %953 = vmatprep.subr.mxu0 0.0
        %954 = vmatpush2.xpose.msra.mxu0 0.0
        %955 = vmatprep.subr.mxu0 0.0
        %956 = vmatpush2.xpose.msra.mxu0 0.0
        %957 = vmatprep.subr.mxu0 0.0
        %958 = vmatpush2.xpose.msra.mxu0 0.0
        %959 = vmatprep.subr.mxu0 0.0
        %960 = vmatpush2.xpose.msra.mxu0 0.0
        %961 = vmatprep.subr.mxu0 0.0
        %962 = vmatpush2.xpose.msra.mxu0 0.0
        %963 = vmatprep.subr.mxu0 0.0
        %964 = vmatpush2.xpose.msra.mxu0 0.0
        %965 = vmatprep.subr.mxu0 0.0
        %966 = vmatpush2.xpose.msra.mxu0 0.0
        %967 = vmatprep.subr.mxu0 0.0
        %968 = vmatpush2.xpose.msra.mxu0 0.0
        %969 = vmatprep.subr.mxu0 0.0
        %970 = vmatpush2.xpose.msra.mxu0 0.0
        %971 = vmatprep.subr.mxu0 0.0
        %972 = vmatpush2.xpose.msra.mxu0 0.0
        %973 = vmatprep.subr.mxu0 0.0
        %974 = vmatpush2.xpose.msra.mxu0 0.0
        %975 = vmatprep.subr.mxu0 0.0
        %976 = vmatpush2.xpose.msra.mxu0 0.0
        %977 = vmatprep.subr.mxu0 0.0
        %978 = vmatpush2.xpose.msra.mxu0 0.0
        %979 = vmatprep.mubr.f32.mxu0 0.0
        %980 = vmatmul.mubr.f32.gmra.mxu0 %v907
        %v981 = vpop.f32.mrf.mxu0
        %v982 = vadd.f32 0.0, %v981
        %v983 = vpop.f32.mrf.mxu0
        %984 = vmatprep.mubr.f32.mxu0 0.0
        %985 = vmatmul.mubr.f32.gmra.mxu0 %v909
        %v986 = vpop.f32.mrf.mxu0
        %v987 = vadd.f32 0.0, %v986
        %v988 = vpop.f32.mrf.mxu0
        %989 = vdwg.mxu0
        %v990 = vsel %vm698, %v982, -1e+30
        %v991 = vsel %vm699, %v987, -1e+30
        %v992 = vsel %vm795, %v990, -inf
        %993 = vmax.xlane.f32.xlu0 %v992
        %v994 = vpop.xlane.xlu0 %993
        %v995 = vsel %vm795, %v991, -inf
        %996 = vmax.xlane.f32.xlu0 %v995
        %v997 = vpop.xlane.xlu0 %996
        %v998 = vsub.f32 %v990, %v994
        %v999 = vsub.f32 %v991, %v997
        %v1000 = vmul.f32 %v998, 1.442695
        %v1001 = vpow.pop %v1000
        %v1002 = vmul.f32 %v999, 1.442695
        %v1003 = vpow.pop %v1002
        %v1004 = vsel %vm795, %v1001, 0.0
        %1005 = vadd.xlane.f32.xlu0 %v1004
        %v1006 = vpop.xlane.xlu0 %1005
        %v1007 = vsel %vm795, %v1003, 0.0
        %1008 = vadd.xlane.f32.xlu0 %v1007
        %v1009 = vpop.xlane.xlu0 %1008
        %v1010 = vrcp.pop %v1006
        %v1011 = vrcp.pop %v1009
        %v1012 = vmul.f32 %v1001, %v1010
        %v1013 = vmul.f32 %v1003, %v1011
        %1016 = vrot.lane.b32.xlu0 %v675, 96
        %v1017 = vpop.permute.xlu0 %1016
        %1018 = vrot.lane.b32.xlu0 %v680, 96
        %v1019 = vpop.permute.xlu0 %1018
        %v1023 = vsel %vm795, %v1012, 0
        %v1026 = vsel %vm795, %v1013, 0
        %1028 = vmatprep.subr.mxu0 0.0
        %1029 = vmatpush1.msra.mxu0 0.0
        %1030 = vmatprep.subr.mxu0 0.0
        %1031 = vmatpush1.msra.mxu0 0.0
        %1032 = vmatprep.subr.mxu0 0.0
        %1033 = vmatpush1.msra.mxu0 0.0
        %1034 = vmatprep.subr.mxu0 0.0
        %1035 = vmatpush1.msra.mxu0 0.0
        %1036 = vmatprep.subr.mxu0 0.0
        %1037 = vmatpush1.msra.mxu0 0.0
        %1038 = vmatprep.subr.mxu0 0.0
        %1039 = vmatpush1.msra.mxu0 0.0
        %1040 = vmatprep.subr.mxu0 0.0
        %1041 = vmatpush1.msra.mxu0 0.0
        %1042 = vmatprep.subr.mxu0 0.0
        %1043 = vmatpush1.msra.mxu0 0.0
        %1044 = vmatprep.subr.mxu0 0.0
        %1045 = vmatpush1.msra.mxu0 0.0
        %1046 = vmatprep.subr.mxu0 0.0
        %1047 = vmatpush1.msra.mxu0 0.0
        %1048 = vmatprep.subr.mxu0 0.0
        %1049 = vmatpush1.msra.mxu0 0.0
        %1050 = vmatprep.subr.mxu0 0.0
        %1051 = vmatpush1.msra.mxu0 0.0
        %1052 = vmatprep.subr.mxu0 0.0
        %1053 = vmatpush1.msra.mxu0 0.0
        %1054 = vmatprep.subr.mxu0 0.0
        %1055 = vmatpush1.msra.mxu0 0.0
        %1056 = vmatprep.subr.mxu0 0.0
        %1057 = vmatpush1.msra.mxu0 %v1019
        %1058 = vmatprep.subr.mxu0 0.0
        %1059 = vmatpush1.msra.mxu0 %v1017
        %1060 = vmatprep.subr.mxu0 0.0
        %1061 = vmatpush2.msra.mxu0 0.0
        %1062 = vmatprep.subr.mxu0 0.0
        %1063 = vmatpush2.msra.mxu0 0.0
        %1064 = vmatprep.subr.mxu0 0.0
        %1065 = vmatpush2.msra.mxu0 0.0
        %1066 = vmatprep.subr.mxu0 0.0
        %1067 = vmatpush2.msra.mxu0 0.0
        %1068 = vmatprep.subr.mxu0 0.0
        %1069 = vmatpush2.msra.mxu0 0.0
        %1070 = vmatprep.subr.mxu0 0.0
        %1071 = vmatpush2.msra.mxu0 0.0
        %1072 = vmatprep.subr.mxu0 0.0
        %1073 = vmatpush2.msra.mxu0 0.0
        %1074 = vmatprep.subr.mxu0 0.0
        %1075 = vmatpush2.msra.mxu0 0.0
        %1076 = vmatprep.subr.mxu0 0.0
        %1077 = vmatpush2.msra.mxu0 0.0
        %1078 = vmatprep.subr.mxu0 0.0
        %1079 = vmatpush2.msra.mxu0 0.0
        %1080 = vmatprep.subr.mxu0 0.0
        %1081 = vmatpush2.msra.mxu0 0.0
        %1082 = vmatprep.subr.mxu0 0.0
        %1083 = vmatpush2.msra.mxu0 0.0
        %1084 = vmatprep.subr.mxu0 0.0
        %1085 = vmatpush2.msra.mxu0 0.0
        %1086 = vmatprep.subr.mxu0 0.0
        %1087 = vmatpush2.msra.mxu0 0.0
        %1088 = vmatprep.subr.mxu0 0.0
        %1089 = vmatpush2.msra.mxu0 0.0
        %1090 = vmatprep.subr.mxu0 0.0
        %1091 = vmatpush2.msra.mxu0 0.0
        %1092 = vmatprep.mubr.f32.mxu0 0.0
        %1093 = vmatmul.mubr.f32.gmra.mxu0 %v1023
        %v1094 = vpop.f32.mrf.mxu0
        %v1095 = vadd.f32 0.0, %v1094
        %v1096 = vpop.f32.mrf.mxu0
        %1097 = vmatprep.mubr.f32.mxu0 0.0
        %1098 = vmatmul.mubr.f32.gmra.mxu0 %v1026
        %v1099 = vpop.f32.mrf.mxu0
        %v1100 = vadd.f32 0.0, %v1099
        %v1101 = vpop.f32.mrf.mxu0
        %1102 = vdwg.mxu0
        %1105 = vrot.lane.b32.xlu0 %v1095, 32
        %v1106 = vpop.permute.xlu0 %1105
        %1107 = vrot.lane.b32.xlu0 %v1100, 32
        %v1108 = vpop.permute.xlu0 %1107
        %v1111 = vsel %vm484, %v891, %v1106
        %v1112 = vsel %vm484, %v896, %v1108
        %v1113 = vld [vmem:[%s5] sm:$0xff]
        %v1114 = vld [vmem:[%s5 + $0x8] sm:$0xff]
        %v1115 = vld [vmem:[%s5 + $0x10] sm:$0xff]
        %v1116 = vld [vmem:[%s5 + $0x18] sm:$0xff]
        %v1117 = vld [vmem:[%s5 + $0x20] sm:$0xff]
        %v1118 = vld [vmem:[%s5 + $0x28] sm:$0xff]
        %v1119 = vld [vmem:[%s5 + $0x30] sm:$0xff]
        %v1120 = vld [vmem:[%s5 + $0x38] sm:$0xff]
        %v1121 = vld [vmem:[%s6] sm:$0x1]
        %v1123 = vlaneseq
        %v1124 = vshrl.u32 %v1123, 7
        %v1125 = vsub.s32 0, %v1124
        %v1126 = vrot.slane %v1121, %v1125
        %vm1128 = vcmask 523264
        %v1130 = vsel %vm1128, %v1111, 0
        %v1133 = vsel %vm1128, %v1112, 0
        %1135 = vmatprep.subr.mxu0 0.0
        %1136 = vmatpush1.msra.mxu0 0.0
        %1137 = vmatprep.subr.mxu0 0.0
        %1138 = vmatpush1.msra.mxu0 0.0
        %1139 = vmatprep.subr.mxu0 0.0
        %1140 = vmatpush1.msra.mxu0 0.0
        %1141 = vmatprep.subr.mxu0 0.0
        %1142 = vmatpush1.msra.mxu0 0.0
        %1143 = vmatprep.subr.mxu0 0.0
        %1144 = vmatpush1.msra.mxu0 0.0
        %1145 = vmatprep.subr.mxu0 0.0
        %1146 = vmatpush1.msra.mxu0 0.0
        %1147 = vmatprep.subr.mxu0 0.0
        %1148 = vmatpush1.msra.mxu0 0.0
        %1149 = vmatprep.subr.mxu0 0.0
        %1150 = vmatpush1.msra.mxu0 0.0
        %1151 = vmatprep.subr.mxu0 0.0
        %1152 = vmatpush1.msra.mxu0 %v1120
        %1153 = vmatprep.subr.mxu0 0.0
        %1154 = vmatpush1.msra.mxu0 %v1119
        %1155 = vmatprep.subr.mxu0 0.0
        %1156 = vmatpush1.msra.mxu0 %v1118
        %1157 = vmatprep.subr.mxu0 0.0
        %1158 = vmatpush1.msra.mxu0 %v1117
        %1159 = vmatprep.subr.mxu0 0.0
        %1160 = vmatpush1.msra.mxu0 %v1116
        %1161 = vmatprep.subr.mxu0 0.0
        %1162 = vmatpush1.msra.mxu0 %v1115
        %1163 = vmatprep.subr.mxu0 0.0
        %1164 = vmatpush1.msra.mxu0 %v1114
        %1165 = vmatprep.subr.mxu0 0.0
        %1166 = vmatpush1.msra.mxu0 %v1113
        %1167 = vmatprep.subr.mxu0 0.0
        %1168 = vmatpush2.msra.mxu0 0.0
        %1169 = vmatprep.subr.mxu0 0.0
        %1170 = vmatpush2.msra.mxu0 0.0
        %1171 = vmatprep.subr.mxu0 0.0
        %1172 = vmatpush2.msra.mxu0 0.0
        %1173 = vmatprep.subr.mxu0 0.0
        %1174 = vmatpush2.msra.mxu0 0.0
        %1175 = vmatprep.subr.mxu0 0.0
        %1176 = vmatpush2.msra.mxu0 0.0
        %1177 = vmatprep.subr.mxu0 0.0
        %1178 = vmatpush2.msra.mxu0 0.0
        %1179 = vmatprep.subr.mxu0 0.0
        %1180 = vmatpush2.msra.mxu0 0.0
        %1181 = vmatprep.subr.mxu0 0.0
        %1182 = vmatpush2.msra.mxu0 0.0
        %1183 = vmatprep.subr.mxu0 0.0
        %1184 = vmatpush2.msra.mxu0 0.0
        %1185 = vmatprep.subr.mxu0 0.0
        %1186 = vmatpush2.msra.mxu0 0.0
        %1187 = vmatprep.subr.mxu0 0.0
        %1188 = vmatpush2.msra.mxu0 0.0
        %1189 = vmatprep.subr.mxu0 0.0
        %1190 = vmatpush2.msra.mxu0 0.0
        %1191 = vmatprep.subr.mxu0 0.0
        %1192 = vmatpush2.msra.mxu0 0.0
        %1193 = vmatprep.subr.mxu0 0.0
        %1194 = vmatpush2.msra.mxu0 0.0
        %1195 = vmatprep.subr.mxu0 0.0
        %1196 = vmatpush2.msra.mxu0 0.0
        %1197 = vmatprep.subr.mxu0 0.0
        %1198 = vmatpush2.msra.mxu0 0.0
        %1199 = vmatprep.mubr.f32.mxu0 0.0
        %1200 = vmatmul.mubr.f32.gmra.mxu0 %v1130
        %v1201 = vpop.f32.mrf.mxu0
        %v1202 = vadd.f32 %v1126, %v1201
        %v1203 = vpop.f32.mrf.mxu0
        %1204 = vmatprep.mubr.f32.mxu0 0.0
        %1205 = vmatmul.mubr.f32.gmra.mxu0 %v1133
        %v1206 = vpop.f32.mrf.mxu0
        %v1207 = vadd.f32 %v1126, %v1206
        %v1208 = vpop.f32.mrf.mxu0
        %1209 = vdwg.mxu0
        %v1210 = vadd.f32 %v511, %v1202
        %v1211 = vadd.f32 %v512, %v1207
        %v1212 = vmul.f32 %v1210, %v1210
        %v1213 = vmul.f32 %v1211, %v1211
        %v1214 = vsel %vm484, %v1212, 0.0
        %v1215 = vsel %vm484, %v1213, 0.0
        %v1216 = vadd.f32 %v1214, %v1215
        %1217 = vadd.xlane.f32.xlu0 %v1216
        %v1218 = vpop.xlane.xlu0 %1217
        %v1219 = vrot.slane %v1218, 4
        %v1220 = vadd.f32 %v1218, %v1219
        %v1221 = vrot.slane %v1220, 2
        %v1222 = vadd.f32 %v1220, %v1221
        %v1223 = vrot.slane %v1222, 1
        %v1224 = vadd.f32 %v1222, %v1223
        %s1225 = vtos %v1224
        %v1226 = vstv %s1225
        %v1227 = vrsqrt.pop %v1226
        %v1228 = vmul.f32 %v1226, %v1227
        %vm1229 = vcmp.eq.f32.partialorder %v1226, inf
        %v1230 = vsel %vm1229, %v1226, %v1228
        %vm1231 = vcmp.eq.f32.partialorder %v1226, 0.0
        %v1232 = vand.u32 %v1226, 2147483648
        %v1233 = vsel %vm1231, %v1232, %v1230
        %s1234 = vtos %v1233
        %s1235 = smul.f32 %s1234, 0.044194173
        %v1236 = vstv %s1235
        %v1237 = vrcp.pop %v1236
        %v1238 = vmul.f32 %v1210, %v1237
        %v1239 = vmul.f32 %v1211, %v1237
        %v1240 = vmul.f32 %v480, %v1238
        %v1241 = vmul.f32 %v481, %v1239
        %v1242 = vld [vmem:[#allocation10] sm:$0xff]
        %v1243 = vld [vmem:[#allocation10 + $0x8] sm:$0xff]
        %v1244 = vld [vmem:[#allocation10 + $0x10] sm:$0xff]
        %v1245 = vld [vmem:[#allocation10 + $0x18] sm:$0xff]
        %v1246 = vld [vmem:[%s8] sm:$0x1]
        %v1248 = vlaneseq
        %v1249 = vshrl.u32 %v1248, 7
        %v1250 = vsub.s32 0, %v1249
        %v1251 = vrot.slane %v1246, %v1250
        %v1254 = vsel %vm484, %v1240, 0
        %v1257 = vsel %vm484, %v1241, 0
        %1259 = vmatprep.subr.mxu0 0.0
        %1260 = vmatpush1.msra.mxu0 0.0
        %1261 = vmatprep.subr.mxu0 0.0
        %1262 = vmatpush1.msra.mxu0 0.0
        %1263 = vmatprep.subr.mxu0 0.0
        %1264 = vmatpush1.msra.mxu0 0.0
        %1265 = vmatprep.subr.mxu0 0.0
        %1266 = vmatpush1.msra.mxu0 0.0
        %1267 = vmatprep.subr.mxu0 0.0
        %1268 = vmatpush1.msra.mxu0 0.0
        %1269 = vmatprep.subr.mxu0 0.0
        %1270 = vmatpush1.msra.mxu0 0.0
        %1271 = vmatprep.subr.mxu0 0.0
        %1272 = vmatpush1.msra.mxu0 0.0
        %1273 = vmatprep.subr.mxu0 0.0
        %1274 = vmatpush1.msra.mxu0 0.0
        %1275 = vmatprep.subr.mxu0 0.0
        %1276 = vmatpush1.msra.mxu0 0.0
        %1277 = vmatprep.subr.mxu0 0.0
        %1278 = vmatpush1.msra.mxu0 0.0
        %1279 = vmatprep.subr.mxu0 0.0
        %1280 = vmatpush1.msra.mxu0 0.0
        %1281 = vmatprep.subr.mxu0 0.0
        %1282 = vmatpush1.msra.mxu0 0.0
        %1283 = vmatprep.subr.mxu0 0.0
        %1284 = vmatpush1.msra.mxu0 %v1245
        %1285 = vmatprep.subr.mxu0 0.0
        %1286 = vmatpush1.msra.mxu0 %v1244
        %1287 = vmatprep.subr.mxu0 0.0
        %1288 = vmatpush1.msra.mxu0 %v1243
        %1289 = vmatprep.subr.mxu0 0.0
        %1290 = vmatpush1.msra.mxu0 %v1242
        %1291 = vmatprep.subr.mxu0 0.0
        %1292 = vmatpush2.msra.mxu0 0.0
        %1293 = vmatprep.subr.mxu0 0.0
        %1294 = vmatpush2.msra.mxu0 0.0
        %1295 = vmatprep.subr.mxu0 0.0
        %1296 = vmatpush2.msra.mxu0 0.0
        %1297 = vmatprep.subr.mxu0 0.0
        %1298 = vmatpush2.msra.mxu0 0.0
        %1299 = vmatprep.subr.mxu0 0.0
        %1300 = vmatpush2.msra.mxu0 0.0
        %1301 = vmatprep.subr.mxu0 0.0
        %1302 = vmatpush2.msra.mxu0 0.0
        %1303 = vmatprep.subr.mxu0 0.0
        %1304 = vmatpush2.msra.mxu0 0.0
        %1305 = vmatprep.subr.mxu0 0.0
        %1306 = vmatpush2.msra.mxu0 0.0
        %1307 = vmatprep.subr.mxu0 0.0
        %1308 = vmatpush2.msra.mxu0 0.0
        %1309 = vmatprep.subr.mxu0 0.0
        %1310 = vmatpush2.msra.mxu0 0.0
        %1311 = vmatprep.subr.mxu0 0.0
        %1312 = vmatpush2.msra.mxu0 0.0
        %1313 = vmatprep.subr.mxu0 0.0
        %1314 = vmatpush2.msra.mxu0 0.0
        %1315 = vmatprep.subr.mxu0 0.0
        %1316 = vmatpush2.msra.mxu0 0.0
        %1317 = vmatprep.subr.mxu0 0.0
        %1318 = vmatpush2.msra.mxu0 0.0
        %1319 = vmatprep.subr.mxu0 0.0
        %1320 = vmatpush2.msra.mxu0 0.0
        %1321 = vmatprep.subr.mxu0 0.0
        %1322 = vmatpush2.msra.mxu0 0.0
        %1323 = vmatprep.mubr.f32.mxu0 0.0
        %1324 = vmatmul.mubr.f32.gmra.mxu0 %v1254
        %v1325 = vpop.f32.mrf.mxu0
        %v1326 = vadd.f32 %v1251, %v1325
        %v1327 = vpop.f32.mrf.mxu0
        %1328 = vmatprep.mubr.f32.mxu0 0.0
        %1329 = vmatmul.mubr.f32.gmra.mxu0 %v1257
        %v1330 = vpop.f32.mrf.mxu0
        %v1331 = vadd.f32 %v1251, %v1330
        %v1332 = vpop.f32.mrf.mxu0
        %1333 = vdwg.mxu0
        %v1334 = vmax.f32 %v1326, 0.0
        %v1335 = vmax.f32 %v1331, 0.0
        %v1336 = vadd.f32 %v1240, %v1334
        %v1337 = vadd.f32 %v1241, %v1335
        %v1338 = vld [vmem:[#allocation11] sm:$0xff]
        %v1339 = vld [vmem:[#allocation11 + $0x8] sm:$0xff]
        %v1340 = vld [vmem:[#allocation11 + $0x10] sm:$0xff]
        %v1341 = vld [vmem:[#allocation11 + $0x18] sm:$0xff]
        %v1342 = vld [vmem:[%s10] sm:$0x1]
        %v1344 = vlaneseq
        %v1345 = vshrl.u32 %v1344, 7
        %v1346 = vsub.s32 0, %v1345
        %v1347 = vrot.slane %v1342, %v1346
        %v1350 = vsel %vm484, %v1336, 0
        %v1353 = vsel %vm484, %v1337, 0
        %1355 = vmatprep.subr.mxu0 0.0
        %1356 = vmatpush1.msra.mxu0 0.0
        %1357 = vmatprep.subr.mxu0 0.0
        %1358 = vmatpush1.msra.mxu0 0.0
        %1359 = vmatprep.subr.mxu0 0.0
        %1360 = vmatpush1.msra.mxu0 0.0
        %1361 = vmatprep.subr.mxu0 0.0
        %1362 = vmatpush1.msra.mxu0 0.0
        %1363 = vmatprep.subr.mxu0 0.0
        %1364 = vmatpush1.msra.mxu0 0.0
        %1365 = vmatprep.subr.mxu0 0.0
        %1366 = vmatpush1.msra.mxu0 0.0
        %1367 = vmatprep.subr.mxu0 0.0
        %1368 = vmatpush1.msra.mxu0 0.0
        %1369 = vmatprep.subr.mxu0 0.0
        %1370 = vmatpush1.msra.mxu0 0.0
        %1371 = vmatprep.subr.mxu0 0.0
        %1372 = vmatpush1.msra.mxu0 0.0
        %1373 = vmatprep.subr.mxu0 0.0
        %1374 = vmatpush1.msra.mxu0 0.0
        %1375 = vmatprep.subr.mxu0 0.0
        %1376 = vmatpush1.msra.mxu0 0.0
        %1377 = vmatprep.subr.mxu0 0.0
        %1378 = vmatpush1.msra.mxu0 0.0
        %1379 = vmatprep.subr.mxu0 0.0
        %1380 = vmatpush1.msra.mxu0 %v1341
        %1381 = vmatprep.subr.mxu0 0.0
        %1382 = vmatpush1.msra.mxu0 %v1340
        %1383 = vmatprep.subr.mxu0 0.0
        %1384 = vmatpush1.msra.mxu0 %v1339
        %1385 = vmatprep.subr.mxu0 0.0
        %1386 = vmatpush1.msra.mxu0 %v1338
        %1387 = vmatprep.subr.mxu0 0.0
        %1388 = vmatpush2.msra.mxu0 0.0
        %1389 = vmatprep.subr.mxu0 0.0
        %1390 = vmatpush2.msra.mxu0 0.0
        %1391 = vmatprep.subr.mxu0 0.0
        %1392 = vmatpush2.msra.mxu0 0.0
        %1393 = vmatprep.subr.mxu0 0.0
        %1394 = vmatpush2.msra.mxu0 0.0
        %1395 = vmatprep.subr.mxu0 0.0
        %1396 = vmatpush2.msra.mxu0 0.0
        %1397 = vmatprep.subr.mxu0 0.0
        %1398 = vmatpush2.msra.mxu0 0.0
        %1399 = vmatprep.subr.mxu0 0.0
        %1400 = vmatpush2.msra.mxu0 0.0
        %1401 = vmatprep.subr.mxu0 0.0
        %1402 = vmatpush2.msra.mxu0 0.0
        %1403 = vmatprep.subr.mxu0 0.0
        %1404 = vmatpush2.msra.mxu0 0.0
        %1405 = vmatprep.subr.mxu0 0.0
        %1406 = vmatpush2.msra.mxu0 0.0
        %1407 = vmatprep.subr.mxu0 0.0
        %1408 = vmatpush2.msra.mxu0 0.0
        %1409 = vmatprep.subr.mxu0 0.0
        %1410 = vmatpush2.msra.mxu0 0.0
        %1411 = vmatprep.subr.mxu0 0.0
        %1412 = vmatpush2.msra.mxu0 0.0
        %1413 = vmatprep.subr.mxu0 0.0
        %1414 = vmatpush2.msra.mxu0 0.0
        %1415 = vmatprep.subr.mxu0 0.0
        %1416 = vmatpush2.msra.mxu0 0.0
        %1417 = vmatprep.subr.mxu0 0.0
        %1418 = vmatpush2.msra.mxu0 0.0
        %1419 = vmatprep.mubr.f32.mxu0 0.0
        %1420 = vmatmul.mubr.f32.gmra.mxu0 %v1350
        %v1421 = vpop.f32.mrf.mxu0
        %v1422 = vadd.f32 %v1347, %v1421
        %v1423 = vpop.f32.mrf.mxu0
        %1424 = vmatprep.mubr.f32.mxu0 0.0
        %1425 = vmatmul.mubr.f32.gmra.mxu0 %v1353
        %v1426 = vpop.f32.mrf.mxu0
        %v1427 = vadd.f32 %v1347, %v1426
        %v1428 = vpop.f32.mrf.mxu0
        %1429 = vdwg.mxu0
        %1430 = vst.msk [vmem:[%s477] sm:$0xff] %vm484, %v1422
        %1431 = vst.msk [vmem:[%s477 + $0x8] sm:$0xff] %vm484, %v1427
        %s1432 = sand.u32 %s275, 1
        %s1433 = scalar_lea.sflag [#allocation4], %s1432
        %s1434 = sand.u32 %s275, 1
        %s1435 = smul.addr %s1434, 16
        %s1436 = scalar_lea.vmem [#allocation13], %s1435
        // Predicated region
        $region89: #{tpu_custom_call.1} parent=63 // pred_check
          %p1437 = pneg %p285
        $region90: #{tpu_custom_call.1} parent=63 // pred_check_branch
          %1439 = sbr.rel (%p1437) target = $region92
        $region91: #{tpu_custom_call.1} parent=63 // pred_region
          %s1441 = ssub.s32 256, 256
          %1442 = vsyncadd %s1433, %s1441
          %s1443 = smul.addr %s31, 2
          %s1444 = smul.addr %s1443, 128
          %s1445 = scalar_lea.hbm %s11, %s1444
          %s1446 = sshll.u32 %s1436, 4
          %s1447 = int_to_ptr.vmem [resolvable:$true] %s1446
          %1452 = dma.vmem_to_hbm [thread:$0]  %s1447, 256, %s1445, %s1433, 128, 128, 8
        $region92: #{tpu_custom_call.1} parent=63 // pred_fallthru
          _
      $region64: #{tpu_custom_call.1} parent=5 // pred_fallthru
        _
      %p1453 = scmp.le.s32.totalorder 2, %s26
      // Predicated region
      $region93: #{tpu_custom_call.1} parent=5 // pred_check
        %p1454 = pneg %p1453
      $region94: #{tpu_custom_call.1} parent=5 // pred_check_branch
        %1456 = sbr.rel (%p1454) target = $region96
      $region95: #{tpu_custom_call.1} parent=5 // pred_region
        %s1457 = ssub.s32 %s26, 2
        // Predicated region
        $region97: #{tpu_custom_call.1} parent=95 // pred_check
          %p1458 = pneg %p291
        $region98: #{tpu_custom_call.1} parent=95 // pred_check_branch
          %1460 = sbr.rel (%p1458) target = $region100
        $region99: #{tpu_custom_call.1} parent=95 // pred_region
          %s1461 = sand.u32 %s276, 1
          %s1462 = scalar_lea.sflag [#allocation4], %s1461
          %s1463 = sand.u32 %s276, 1
          %s1464 = smul.addr %s1463, 16
          %s1465 = scalar_lea.vmem [#allocation13], %s1464
          %1466 = dma.done %s1462, 256
        $region100: #{tpu_custom_call.1} parent=95 // pred_fallthru
          _
      $region96: #{tpu_custom_call.1} parent=5 // pred_fallthru
        _
    $region6: #{tpu_custom_call.1} parent=1 // loop_footer
      %s30 = sadd.s32 1, %s26
    $region7: #{tpu_custom_call.1} parent=1 // loop_footer_branch
      %25 = sbr.rel target = $region3
    $region8: #{tpu_custom_call.1} parent=1 // loop_exit
      _
    %1467 = vsyncpa [#allocation3], 1
    %s1468 = scalar_lea.sflag [#allocation3], 1
    %1469 = vsyncpa %s1468, 1
    %1470 = vsyncpa [#allocation6], 1
    %1471 = vsyncpa [#allocation9], 1
    %1472 = vsyncpa [#allocation12], 1
    %1473 = vsyncpa [#allocation4], 1
    %s1474 = scalar_lea.sflag [#allocation4], 1
    %1475 = vsyncpa %s1474, 1

</llo_original>
